<compile_context>
chip_gen: v7x
topology: tpu7x:2x2x1
jax: 0.10.0
libtpu: 0.0.40
codegen_flags: <defaults>
</compile_context>

<pallas_src>
import numpy as np
import jax
import jax.numpy as jnp
from jax import lax
from jax.experimental import pallas as pl
from jax.experimental.pallas import tpu as pltpu

# contract the last dim of both operands (q @ k.T orientation)
_NT_DIMS = (((1,), (1,)), ((), ()))


def _mention_scores_kernel(x_ref, mcol_ref, mrow_ref, wcol_ref, wrow_ref,
                           bias_ref, out_ref):
    S = x_ref.shape[1]                     # padded sequence length (mult of 128)
    TM = out_ref.shape[1]                  # row-tile size
    TN = TM                                # column-chunk size (same tile)
    n_chunks = S // TN

    f32 = jnp.float32
    neg_inf = f32(-jnp.inf)
    zero = f32(0.0)
    one = f32(1.0)

    t = pl.program_id(1)
    row0 = pl.multiple_of(t * TM, TM)      # first output row of this tile

    b_start = bias_ref[0]
    b_end = bias_ref[1]
    b_ment = bias_ref[2]

    # tiny triangular constants, built in-kernel (TM^2 compares; no (S,S)
    # operand anywhere)
    ri = lax.broadcasted_iota(jnp.int32, (TM, TM), 0)
    ci = lax.broadcasted_iota(jnp.int32, (TM, TM), 1)
    tri_incl = jnp.where(ri <= ci, one, zero)     # [k, j] = 1 iff k <= j
    tri_excl = one - tri_incl                     # [i, k] = 1 iff k <  i

    sub2 = lax.broadcasted_iota(jnp.int32, (2, TN), 0)

    # ---- pass 1: row side (per output column j), chunked along lanes --------
    run_carry = jnp.zeros((2, 1), f32)     # inclusive prefix over previous chunks
    col_carry = jnp.zeros((2, 1), f32)     # prefix over columns k < row0
    b_rows = []
    masks = []
    for c in range(n_chunks):
        c0 = c * TN
        x_c = x_ref[0, c0:c0 + TN, :]                              # (TN, H)
        mask_c = mrow_ref[0, :, c0:c0 + TN] != 0                   # (1, TN)
        # [end, mention] channels: (2,H) x (TN,H) contracting H (MXU), so the
        # S axis stays in the lane dim without any transposed HBM copy.
        rows_c = lax.dot_general(wrow_ref[...], x_c, _NT_DIMS,
                                 preferred_element_type=f32)        # (2, TN)
        end_c = jnp.where(mask_c, rows_c[0:1, :] + b_end, neg_inf)
        ment_c = jnp.where(mask_c, rows_c[1:2, :] + b_ment, zero)
        inval_c = jnp.where(mask_c, zero, one)
        p_c = jnp.where(sub2 == 0, ment_c, inval_c)                 # (2, TN)

        # inclusive prefix within the chunk (+ carry from previous chunks)
        incl_c = run_carry + jnp.dot(p_c, tri_incl,
                                     preferred_element_type=f32)    # (2, TN)
        end_cum_c = jnp.where(incl_c[1:2, :] > 0.5, neg_inf, incl_c[0:1, :])
        b_rows.append(end_c + end_cum_c)                            # (1, TN)
        masks.append(mask_c)

        tot_c = jnp.sum(p_c, axis=1, keepdims=True)                 # (2, 1)
        run_carry = run_carry + tot_c
        # chunks strictly left of this row-tile feed the column-side carry
        col_carry = col_carry + jnp.where(row0 > c0, tot_c, zero)

    # ---- column side (per output row i of this row-tile) --------------------
    x_t = x_ref[0, pl.ds(row0, TM), :]                              # (TM, H)
    mask_col = mcol_ref[0] != 0                                     # (TM, 1)
    cols = jnp.dot(x_t, wcol_ref[...], preferred_element_type=f32)  # (TM, 2)
    start_col = jnp.where(mask_col, cols[:, 0:1] + b_start, neg_inf)
    ment_col = jnp.where(mask_col, cols[:, 1:2] + b_ment, zero)
    inval_col = jnp.where(mask_col, zero, one)
    lane2 = lax.broadcasted_iota(jnp.int32, (TM, 2), 1)
    p_col = jnp.where(lane2 == 0, ment_col, inval_col)              # (TM, 2)

    excl_loc = jnp.dot(tri_excl, p_col, preferred_element_type=f32)  # (TM, 2)
    excl_fin = col_carry[0:1, :] + excl_loc[:, 0:1]                 # (TM, 1)
    excl_cnt = col_carry[1:2, :] + excl_loc[:, 1:2]                 # (TM, 1)
    start_cum = jnp.where(excl_cnt > 0.5, neg_inf, excl_fin)        # (TM, 1)
    a_col = start_col - start_cum                                   # (TM, 1)

    # ---- pass 2: write (TM, TN) lane-dense tiles of the score matrix --------
    gri = lax.broadcasted_iota(jnp.int32, (TM, TN), 0) + row0
    gci0 = lax.broadcasted_iota(jnp.int32, (TM, TN), 1)
    for c in range(n_chunks):
        c0 = c * TN
        scores_c = a_col + b_rows[c]                                # (TM, TN)
        valid_c = ((gci0 + c0) >= gri) & masks[c]                   # (TM, TN)
        out_ref[0, :, c0:c0 + TN] = jnp.where(
            valid_c, scores_c, neg_inf).astype(out_ref.dtype)


def mention_scores_head(bert_output, input_mask, weight, bias,
                        max_mention_length=10, *, row_tile=None,
                        out_dtype=jnp.float32):
    """
    bert_output: (B, S, H) float32 / bfloat16
    input_mask : (B, S) bool
    weight     : (H, 3)  (== torch Linear .weight.T), channels [start, end, mention]
    bias       : (3,)
    Returns (mention_scores (B, K) out_dtype, mention_bounds (B, K, 2) int32)
    """
    B, S, H = bert_output.shape
    dt = bert_output.dtype

    # pad the sequence axis to a multiple of 128 so every block / store is
    # lane-dense; padded tokens are masked and dropped by the gather below.
    S_pad = ((S + 127) // 128) * 128
    if S_pad != S:
        bert_output = jnp.pad(bert_output, ((0, 0), (0, S_pad - S), (0, 0)))
        input_mask = jnp.pad(input_mask, ((0, 0), (0, S_pad - S)))

    if row_tile is None:
        row_tile = 256 if S_pad % 256 == 0 else 128
    TM = int(row_tile)
    assert TM % 128 == 0 and S_pad % TM == 0, "row_tile must be a multiple of 128 dividing the padded S"
    T = S_pad // TM

    mask_i32 = input_mask.astype(jnp.int32)
    mask_col = mask_i32[:, :, None]                      # (B, S_pad, 1)
    mask_row = mask_i32[:, None, :]                      # (B, 1, S_pad)

    w = weight.astype(dt)
    w_col = jnp.concatenate([w[:, 0:1], w[:, 2:3]], axis=1)      # (H, 2): start, ment
    w_row = jnp.concatenate([w[:, 1:2], w[:, 2:3]], axis=1).T    # (2, H): end, ment

    x_bytes = jnp.dtype(dt).itemsize
    o_bytes = jnp.dtype(out_dtype).itemsize
    vmem_need = (
        2 * S_pad * H * x_bytes            # bert_output block (double-buffered)
        + 2 * TM * S_pad * o_bytes         # output block (double-buffered)
        + 2 * (TM + S_pad) * 4             # mask blocks
        + 4 * 2 * H * x_bytes              # weight blocks
        + 16 * TM * TM * 4                 # in-kernel triangles / tile temps
        + 48 * S_pad * 4                   # per-chunk row vectors kept live
        + (8 << 20))                       # headroom for compiler scratch
    # NOTE: on v7x (64 MiB physical VMEM) pass a smaller row_tile if this
    # estimate approaches ~56 MiB.
    vmem_limit = int(min(max(vmem_need, 32 << 20), 100 << 20))

    out = pl.pallas_call(
        _mention_scores_kernel,
        out_shape=jax.ShapeDtypeStruct((B, S_pad, S_pad), out_dtype),
        grid=(B, T),
        in_specs=[
            pl.BlockSpec((1, S_pad, H), lambda b, t: (b, 0, 0)),     # bert_output
            pl.BlockSpec((1, TM, 1), lambda b, t: (b, t, 0)),        # mask, column view (this tile)
            pl.BlockSpec((1, 1, S_pad), lambda b, t: (b, 0, 0)),     # mask, row view (lane-dense)
            pl.BlockSpec((H, 2), lambda b, t: (0, 0)),               # w_col (fetched once)
            pl.BlockSpec((2, H), lambda b, t: (0, 0)),               # w_row (fetched once)
            pl.BlockSpec(memory_space=pltpu.MemorySpace.SMEM),       # bias (3,)
        ],
        out_specs=pl.BlockSpec((1, TM, S_pad), lambda b, t: (b, t, 0)),
        compiler_params=pltpu.CompilerParams(
            dimension_semantics=("parallel", "parallel"),
            vmem_limit_bytes=vmem_limit),
    )(bert_output, mask_col, mask_row, w_col, w_row, bias.astype(jnp.float32))

    # --- glue: flatten, build bounds, drop padding + long spans (static idx) --
    # TODO(synk): fuse this band gather into the kernel store (flat banded
    # output) to avoid writing and re-reading the full (B, S_pad, S_pad) slab.
    scores_flat = out.reshape(B, S_pad * S_pad)

    ii = np.arange(S_pad).reshape(S_pad, 1).repeat(S_pad, axis=1)
    jj = np.arange(S_pad).reshape(1, S_pad).repeat(S_pad, axis=0)
    bounds_np = np.stack([ii, jj], axis=-1).reshape(-1, 2)          # (S_pad^2, 2)
    keep = (bounds_np[:, 0] < S) & (bounds_np[:, 1] < S)
    if max_mention_length is not None:
        keep &= (bounds_np[:, 1] - bounds_np[:, 0] + 1) <= max_mention_length
    keep_idx = np.nonzero(keep)[0]                                  # static, batch-independent

    mention_scores = scores_flat[:, keep_idx]
    bounds_np = bounds_np[keep_idx]
    mention_bounds = jnp.broadcast_to(
        jnp.asarray(bounds_np, dtype=jnp.int32)[None],
        (B, bounds_np.shape[0], 2))
    return mention_scores, mention_bounds


def _reference(bert_output, input_mask, weight, bias, max_mention_length):
    """Pure-JAX port of the PyTorch forward for checking."""
    B, S, H = bert_output.shape
    neg = -jnp.inf
    x = bert_output.astype(jnp.float32)
    logits = jnp.einsum("bsh,hc->bsc", x, weight.astype(jnp.float32)) + bias.astype(jnp.float32)
    start = jnp.where(input_mask, logits[..., 0], neg)
    end = jnp.where(input_mask, logits[..., 1], neg)
    ment = jnp.where(input_mask, logits[..., 2], neg)
    incl = jnp.cumsum(ment, axis=1)                                         # sum_{k<=j}
    excl = jnp.concatenate([jnp.zeros((B, 1), jnp.float32), incl[:, :-1]], axis=1)
    scores = start[:, :, None] + end[:, None, :] + (incl[:, None, :] - excl[:, :, None])
    ii = np.arange(S).reshape(S, 1).repeat(S, axis=1)
    jj = np.arange(S).reshape(1, S).repeat(S, axis=0)
    valid = (jnp.asarray(jj - ii + 1) > 0)[None] & input_mask[:, None, :]
    scores = jnp.where(valid, scores, neg).reshape(B, S * S)
    bounds = np.stack([ii, jj], axis=-1).reshape(-1, 2)
    keep = np.ones(bounds.shape[0], dtype=bool)
    if max_mention_length is not None:
        keep = (bounds[:, 1] - bounds[:, 0] + 1) <= max_mention_length
    keep_idx = np.nonzero(keep)[0]
    ref_bounds = jnp.broadcast_to(
        jnp.asarray(bounds[keep_idx], jnp.int32)[None], (B, keep_idx.shape[0], 2))
    return scores[:, keep_idx], ref_bounds


if __name__ == "__main__":
    B, S, H = 2, 200, 64           # S=200 -> padded to 256, 2 row-tiles of 128
    max_mention_length = 6

    key = jax.random.PRNGKey(0)
    k1, k2, k3 = jax.random.split(key, 3)
    bert_output = jax.random.normal(k1, (B, S, H), dtype=jnp.float32)
    weight = 0.1 * jax.random.normal(k2, (H, 3), dtype=jnp.float32)   # == Linear.weight.T
    bias = 0.1 * jax.random.normal(k3, (3,), dtype=jnp.float32)

    lengths = jnp.array([S, 130], dtype=jnp.int32)
    input_mask = jnp.arange(S, dtype=jnp.int32)[None, :] < lengths[:, None]   # (B, S) bool

    scores, bounds = mention_scores_head(
        bert_output, input_mask, weight, bias,
        max_mention_length=max_mention_length, row_tile=128)
    jax.block_until_ready((scores, bounds))

    ref_scores, ref_bounds = _reference(
        bert_output, input_mask, weight, bias, max_mention_length)
    np.testing.assert_allclose(np.asarray(scores), np.asarray(ref_scores),
                               rtol=1e-4, atol=1e-4)
    assert np.array_equal(np.asarray(bounds), np.asarray(ref_bounds))
    print("KERNEL_OK")
</pallas_src>

<mosaic_0001>
module attributes {stable_mosaic.version = 11 : i64} {
  func.func @_mention_scores_kernel(%arg0: i32, %arg1: i32, %arg2: memref<1x256x64xf32, #tpu.memory_space<vmem>>, %arg3: memref<1x128x1xi32, #tpu.memory_space<vmem>>, %arg4: memref<1x1x256xi32, #tpu.memory_space<vmem>>, %arg5: memref<64x2xf32, #tpu.memory_space<vmem>>, %arg6: memref<2x64xf32, #tpu.memory_space<vmem>>, %arg7: memref<3xf32, #tpu.memory_space<smem>>, %arg8: memref<1x128x256xf32, #tpu.memory_space<vmem>>) attributes {dimension_semantics = [#tpu.dimension_semantics<parallel>, #tpu.dimension_semantics<parallel>], iteration_bounds = array<i64: 2, 2>, scalar_prefetch = 0 : i64, scratch_operands = 0 : i64, tpu.core_type = #tpu.core_type<tc>, window_params = [{transform_indices = @transform_0, window_bounds = array<i64: 1, 256, 64>}, {transform_indices = @transform_1, window_bounds = array<i64: 1, 128, 1>}, {transform_indices = @transform_2, window_bounds = array<i64: 1, 1, 256>}, {pipeline_mode = #tpu.pipeline_mode<synchronous>, transform_indices = @transform_3, window_bounds = array<i64: 64, 2>}, {pipeline_mode = #tpu.pipeline_mode<synchronous>, transform_indices = @transform_4, window_bounds = array<i64: 2, 64>}, {transform_indices = @transform_5, window_bounds = array<i64: 3>}, {transform_indices = @transform_6, window_bounds = array<i64: 1, 128, 256>}]} {
    %c128_i32 = arith.constant 128 : i32
    %0 = arith.muli %arg1, %c128_i32 : i32
    %1 = tpu.assume_multiple %0, 128 : i32
    %c0 = arith.constant 0 : index
    %2 = memref.load %arg7[%c0] : memref<3xf32, #tpu.memory_space<smem>>
    %c1 = arith.constant 1 : index
    %3 = memref.load %arg7[%c1] : memref<3xf32, #tpu.memory_space<smem>>
    %c2 = arith.constant 2 : index
    %4 = memref.load %arg7[%c2] : memref<3xf32, #tpu.memory_space<smem>>
    %5 = tpu.iota {dimensions = array<i32: 0>} : vector<128x128xi32>
    %6 = tpu.iota {dimensions = array<i32: 1>} : vector<128x128xi32>
    %7 = arith.cmpi sle, %5, %6 : vector<128x128xi32>
    %cst = arith.constant 1.000000e+00 : f32
    %cst_0 = arith.constant 0.000000e+00 : f32
    %8 = vector.broadcast %cst : f32 to vector<128x128xf32>
    %9 = vector.broadcast %cst_0 : f32 to vector<128x128xf32>
    %10 = arith.select %7, %8, %9 : vector<128x128xi1>, vector<128x128xf32>
    %cst_1 = arith.constant 1.000000e+00 : f32
    %11 = vector.broadcast %cst_1 : f32 to vector<128x128xf32>
    %12 = arith.subf %11, %10 : vector<128x128xf32>
    %13 = tpu.iota {dimensions = array<i32: 0>} : vector<2x128xi32>
    %cst_2 = arith.constant 0.000000e+00 : f32
    %14 = vector.broadcast %cst_2 : f32 to vector<2x1xf32>
    %cst_3 = arith.constant 0.000000e+00 : f32
    %15 = vector.broadcast %cst_3 : f32 to vector<2x1xf32>
    %c0_4 = arith.constant 0 : index
    %c0_5 = arith.constant 0 : index
    %c0_6 = arith.constant 0 : index
    %16 = vector.load %arg2[%c0_4, %c0_5, %c0_6] : memref<1x256x64xf32, #tpu.memory_space<vmem>>, vector<1x128x64xf32>
    %17 = vector.shape_cast %16 : vector<1x128x64xf32> to vector<128x64xf32>
    %c0_7 = arith.constant 0 : index
    %c0_8 = arith.constant 0 : index
    %c0_9 = arith.constant 0 : index
    %18 = vector.load %arg4[%c0_7, %c0_8, %c0_9] : memref<1x1x256xi32, #tpu.memory_space<vmem>>, vector<1x1x128xi32>
    %19 = vector.shape_cast %18 : vector<1x1x128xi32> to vector<1x128xi32>
    %c0_i32 = arith.constant 0 : i32
    %20 = vector.broadcast %c0_i32 : i32 to vector<1x128xi32>
    %21 = arith.cmpi ne, %19, %20 : vector<1x128xi32>
    %c0_10 = arith.constant 0 : index
    %c0_11 = arith.constant 0 : index
    %22 = vector.load %arg6[%c0_10, %c0_11] : memref<2x64xf32, #tpu.memory_space<vmem>>, vector<2x64xf32>
    %cst_12 = arith.constant dense<0.000000e+00> : vector<2x128xf32>
    %23 = tpu.matmul %22, %17, %cst_12 {dimension_numbers = #tpu.dot_dimension_numbers<[1], [1], [0], [0], [0, 0, 1, 0], [], []>} : vector<2x64xf32>, vector<128x64xf32>, vector<2x128xf32> -> vector<2x128xf32>
    %24 = vector.extract_strided_slice %23 {offsets = [0, 0], sizes = [1, 128], strides = [1, 1]} : vector<2x128xf32> to vector<1x128xf32>
    %25 = vector.broadcast %3 : f32 to vector<1x128xf32>
    %26 = arith.addf %24, %25 : vector<1x128xf32>
    %cst_13 = arith.constant 0xFF800000 : f32
    %27 = vector.broadcast %cst_13 : f32 to vector<1x128xf32>
    %28 = arith.select %21, %26, %27 : vector<1x128xi1>, vector<1x128xf32>
    %29 = vector.extract_strided_slice %23 {offsets = [1, 0], sizes = [1, 128], strides = [1, 1]} : vector<2x128xf32> to vector<1x128xf32>
    %30 = vector.broadcast %4 : f32 to vector<1x128xf32>
    %31 = arith.addf %29, %30 : vector<1x128xf32>
    %cst_14 = arith.constant 0.000000e+00 : f32
    %32 = vector.broadcast %cst_14 : f32 to vector<1x128xf32>
    %33 = arith.select %21, %31, %32 : vector<1x128xi1>, vector<1x128xf32>
    %cst_15 = arith.constant 0.000000e+00 : f32
    %cst_16 = arith.constant 1.000000e+00 : f32
    %34 = vector.broadcast %cst_15 : f32 to vector<1x128xf32>
    %35 = vector.broadcast %cst_16 : f32 to vector<1x128xf32>
    %36 = arith.select %21, %34, %35 : vector<1x128xi1>, vector<1x128xf32>
    %c0_i32_17 = arith.constant 0 : i32
    %37 = vector.broadcast %c0_i32_17 : i32 to vector<2x128xi32>
    %38 = arith.cmpi eq, %13, %37 : vector<2x128xi32>
    %39 = vector.shape_cast %33 : vector<1x128xf32> to vector<1x128xf32>
    %40 = vector.broadcast %39 : vector<1x128xf32> to vector<2x128xf32>
    %41 = vector.shape_cast %36 : vector<1x128xf32> to vector<1x128xf32>
    %42 = vector.broadcast %41 : vector<1x128xf32> to vector<2x128xf32>
    %43 = arith.select %38, %40, %42 : vector<2x128xi1>, vector<2x128xf32>
    %cst_18 = arith.constant dense<0.000000e+00> : vector<2x128xf32>
    %44 = tpu.matmul %43, %10, %cst_18 {dimension_numbers = #tpu.dot_dimension_numbers<[1], [0], [0], [1], [0, 0, 1, 1], [], []>} : vector<2x128xf32>, vector<128x128xf32>, vector<2x128xf32> -> vector<2x128xf32>
    %45 = vector.broadcast %14 : vector<2x1xf32> to vector<2x128xf32>
    %46 = arith.addf %45, %44 : vector<2x128xf32>
    %47 = vector.extract_strided_slice %46 {offsets = [1, 0], sizes = [1, 128], strides = [1, 1]} : vector<2x128xf32> to vector<1x128xf32>
    %cst_19 = arith.constant 5.000000e-01 : f32
    %48 = vector.broadcast %cst_19 : f32 to vector<1x128xf32>
    %49 = arith.cmpf ogt, %47, %48 : vector<1x128xf32>
    %50 = vector.extract_strided_slice %46 {offsets = [0, 0], sizes = [1, 128], strides = [1, 1]} : vector<2x128xf32> to vector<1x128xf32>
    %cst_20 = arith.constant 0xFF800000 : f32
    %51 = vector.broadcast %cst_20 : f32 to vector<1x128xf32>
    %52 = arith.select %49, %51, %50 : vector<1x128xi1>, vector<1x128xf32>
    %53 = arith.addf %28, %52 : vector<1x128xf32>
    %cst_21 = arith.constant dense<0.000000e+00> : vector<2xf32>
    %54 = vector.multi_reduction <add>, %43, %cst_21 [1] : vector<2x128xf32> to vector<2xf32>
    %55 = vector.shape_cast %54 : vector<2xf32> to vector<2x1xf32>
    %56 = arith.addf %14, %55 : vector<2x1xf32>
    %c0_i32_22 = arith.constant 0 : i32
    %57 = arith.cmpi sgt, %1, %c0_i32_22 : i32
    %cst_23 = arith.constant 0.000000e+00 : f32
    %58 = vector.broadcast %cst_23 : f32 to vector<2x1xf32>
    %59 = arith.select %57, %55, %58 : vector<2x1xf32>
    %60 = arith.addf %15, %59 : vector<2x1xf32>
    %c0_24 = arith.constant 0 : index
    %c128 = arith.constant 128 : index
    %c0_25 = arith.constant 0 : index
    %61 = vector.load %arg2[%c0_24, %c128, %c0_25] : memref<1x256x64xf32, #tpu.memory_space<vmem>>, vector<1x128x64xf32>
    %62 = vector.shape_cast %61 : vector<1x128x64xf32> to vector<128x64xf32>
    %c0_26 = arith.constant 0 : index
    %c0_27 = arith.constant 0 : index
    %c128_28 = arith.constant 128 : index
    %63 = vector.load %arg4[%c0_26, %c0_27, %c128_28] : memref<1x1x256xi32, #tpu.memory_space<vmem>>, vector<1x1x128xi32>
    %64 = vector.shape_cast %63 : vector<1x1x128xi32> to vector<1x128xi32>
    %c0_i32_29 = arith.constant 0 : i32
    %65 = vector.broadcast %c0_i32_29 : i32 to vector<1x128xi32>
    %66 = arith.cmpi ne, %64, %65 : vector<1x128xi32>
    %c0_30 = arith.constant 0 : index
    %c0_31 = arith.constant 0 : index
    %67 = vector.load %arg6[%c0_30, %c0_31] : memref<2x64xf32, #tpu.memory_space<vmem>>, vector<2x64xf32>
    %cst_32 = arith.constant dense<0.000000e+00> : vector<2x128xf32>
    %68 = tpu.matmul %67, %62, %cst_32 {dimension_numbers = #tpu.dot_dimension_numbers<[1], [1], [0], [0], [0, 0, 1, 0], [], []>} : vector<2x64xf32>, vector<128x64xf32>, vector<2x128xf32> -> vector<2x128xf32>
    %69 = vector.extract_strided_slice %68 {offsets = [0, 0], sizes = [1, 128], strides = [1, 1]} : vector<2x128xf32> to vector<1x128xf32>
    %70 = vector.broadcast %3 : f32 to vector<1x128xf32>
    %71 = arith.addf %69, %70 : vector<1x128xf32>
    %cst_33 = arith.constant 0xFF800000 : f32
    %72 = vector.broadcast %cst_33 : f32 to vector<1x128xf32>
    %73 = arith.select %66, %71, %72 : vector<1x128xi1>, vector<1x128xf32>
    %74 = vector.extract_strided_slice %68 {offsets = [1, 0], sizes = [1, 128], strides = [1, 1]} : vector<2x128xf32> to vector<1x128xf32>
    %75 = vector.broadcast %4 : f32 to vector<1x128xf32>
    %76 = arith.addf %74, %75 : vector<1x128xf32>
    %cst_34 = arith.constant 0.000000e+00 : f32
    %77 = vector.broadcast %cst_34 : f32 to vector<1x128xf32>
    %78 = arith.select %66, %76, %77 : vector<1x128xi1>, vector<1x128xf32>
    %cst_35 = arith.constant 0.000000e+00 : f32
    %cst_36 = arith.constant 1.000000e+00 : f32
    %79 = vector.broadcast %cst_35 : f32 to vector<1x128xf32>
    %80 = vector.broadcast %cst_36 : f32 to vector<1x128xf32>
    %81 = arith.select %66, %79, %80 : vector<1x128xi1>, vector<1x128xf32>
    %c0_i32_37 = arith.constant 0 : i32
    %82 = vector.broadcast %c0_i32_37 : i32 to vector<2x128xi32>
    %83 = arith.cmpi eq, %13, %82 : vector<2x128xi32>
    %84 = vector.shape_cast %78 : vector<1x128xf32> to vector<1x128xf32>
    %85 = vector.broadcast %84 : vector<1x128xf32> to vector<2x128xf32>
    %86 = vector.shape_cast %81 : vector<1x128xf32> to vector<1x128xf32>
    %87 = vector.broadcast %86 : vector<1x128xf32> to vector<2x128xf32>
    %88 = arith.select %83, %85, %87 : vector<2x128xi1>, vector<2x128xf32>
    %cst_38 = arith.constant dense<0.000000e+00> : vector<2x128xf32>
    %89 = tpu.matmul %88, %10, %cst_38 {dimension_numbers = #tpu.dot_dimension_numbers<[1], [0], [0], [1], [0, 0, 1, 1], [], []>} : vector<2x128xf32>, vector<128x128xf32>, vector<2x128xf32> -> vector<2x128xf32>
    %90 = vector.broadcast %56 : vector<2x1xf32> to vector<2x128xf32>
    %91 = arith.addf %90, %89 : vector<2x128xf32>
    %92 = vector.extract_strided_slice %91 {offsets = [1, 0], sizes = [1, 128], strides = [1, 1]} : vector<2x128xf32> to vector<1x128xf32>
    %cst_39 = arith.constant 5.000000e-01 : f32
    %93 = vector.broadcast %cst_39 : f32 to vector<1x128xf32>
    %94 = arith.cmpf ogt, %92, %93 : vector<1x128xf32>
    %95 = vector.extract_strided_slice %91 {offsets = [0, 0], sizes = [1, 128], strides = [1, 1]} : vector<2x128xf32> to vector<1x128xf32>
    %cst_40 = arith.constant 0xFF800000 : f32
    %96 = vector.broadcast %cst_40 : f32 to vector<1x128xf32>
    %97 = arith.select %94, %96, %95 : vector<1x128xi1>, vector<1x128xf32>
    %98 = arith.addf %73, %97 : vector<1x128xf32>
    %cst_41 = arith.constant dense<0.000000e+00> : vector<2xf32>
    %99 = vector.multi_reduction <add>, %88, %cst_41 [1] : vector<2x128xf32> to vector<2xf32>
    %100 = vector.shape_cast %99 : vector<2xf32> to vector<2x1xf32>
    %c128_i32_42 = arith.constant 128 : i32
    %101 = arith.cmpi sgt, %1, %c128_i32_42 : i32
    %cst_43 = arith.constant 0.000000e+00 : f32
    %102 = vector.broadcast %cst_43 : f32 to vector<2x1xf32>
    %103 = arith.select %101, %100, %102 : vector<2x1xf32>
    %104 = arith.addf %60, %103 : vector<2x1xf32>
    %c0_44 = arith.constant 0 : index
    %105 = arith.index_cast %1 : i32 to index
    %c0_45 = arith.constant 0 : index
    %106 = vector.load %arg2[%c0_44, %105, %c0_45] : memref<1x256x64xf32, #tpu.memory_space<vmem>>, vector<1x128x64xf32>
    %107 = vector.shape_cast %106 : vector<1x128x64xf32> to vector<128x64xf32>
    %c0_46 = arith.constant 0 : index
    %c0_47 = arith.constant 0 : index
    %c0_48 = arith.constant 0 : index
    %108 = vector.load %arg3[%c0_46, %c0_47, %c0_48] : memref<1x128x1xi32, #tpu.memory_space<vmem>>, vector<1x128x1xi32>
    %109 = vector.shape_cast %108 : vector<1x128x1xi32> to vector<128x1xi32>
    %c0_i32_49 = arith.constant 0 : i32
    %110 = vector.broadcast %c0_i32_49 : i32 to vector<128x1xi32>
    %111 = arith.cmpi ne, %109, %110 : vector<128x1xi32>
    %c0_50 = arith.constant 0 : index
    %c0_51 = arith.constant 0 : index
    %112 = vector.load %arg5[%c0_50, %c0_51] : memref<64x2xf32, #tpu.memory_space<vmem>>, vector<64x2xf32>
    %cst_52 = arith.constant dense<0.000000e+00> : vector<128x2xf32>
    %113 = tpu.matmul %107, %112, %cst_52 {dimension_numbers = #tpu.dot_dimension_numbers<[1], [0], [0], [1], [0, 0, 1, 1], [], []>} : vector<128x64xf32>, vector<64x2xf32>, vector<128x2xf32> -> vector<128x2xf32>
    %114 = vector.extract_strided_slice %113 {offsets = [0, 0], sizes = [128, 1], strides = [1, 1]} : vector<128x2xf32> to vector<128x1xf32>
    %115 = vector.broadcast %2 : f32 to vector<128x1xf32>
    %116 = arith.addf %114, %115 : vector<128x1xf32>
    %cst_53 = arith.constant 0xFF800000 : f32
    %117 = vector.broadcast %cst_53 : f32 to vector<128x1xf32>
    %118 = arith.select %111, %116, %117 : vector<128x1xi1>, vector<128x1xf32>
    %119 = vector.extract_strided_slice %113 {offsets = [0, 1], sizes = [128, 1], strides = [1, 1]} : vector<128x2xf32> to vector<128x1xf32>
    %120 = vector.broadcast %4 : f32 to vector<128x1xf32>
    %121 = arith.addf %119, %120 : vector<128x1xf32>
    %cst_54 = arith.constant 0.000000e+00 : f32
    %122 = vector.broadcast %cst_54 : f32 to vector<128x1xf32>
    %123 = arith.select %111, %121, %122 : vector<128x1xi1>, vector<128x1xf32>
    %cst_55 = arith.constant 0.000000e+00 : f32
    %cst_56 = arith.constant 1.000000e+00 : f32
    %124 = vector.broadcast %cst_55 : f32 to vector<128x1xf32>
    %125 = vector.broadcast %cst_56 : f32 to vector<128x1xf32>
    %126 = arith.select %111, %124, %125 : vector<128x1xi1>, vector<128x1xf32>
    %127 = tpu.iota {dimensions = array<i32: 1>} : vector<128x2xi32>
    %c0_i32_57 = arith.constant 0 : i32
    %128 = vector.broadcast %c0_i32_57 : i32 to vector<128x2xi32>
    %129 = arith.cmpi eq, %127, %128 : vector<128x2xi32>
    %130 = vector.shape_cast %123 : vector<128x1xf32> to vector<128x1xf32>
    %131 = vector.broadcast %130 : vector<128x1xf32> to vector<128x2xf32>
    %132 = vector.shape_cast %126 : vector<128x1xf32> to vector<128x1xf32>
    %133 = vector.broadcast %132 : vector<128x1xf32> to vector<128x2xf32>
    %134 = arith.select %129, %131, %133 : vector<128x2xi1>, vector<128x2xf32>
    %cst_58 = arith.constant dense<0.000000e+00> : vector<128x2xf32>
    %135 = tpu.matmul %12, %134, %cst_58 {dimension_numbers = #tpu.dot_dimension_numbers<[1], [0], [0], [1], [0, 0, 1, 1], [], []>} : vector<128x128xf32>, vector<128x2xf32>, vector<128x2xf32> -> vector<128x2xf32>
    %136 = vector.extract_strided_slice %104 {offsets = [0, 0], sizes = [1, 1], strides = [1, 1]} : vector<2x1xf32> to vector<1x1xf32>
    %137 = vector.extract_strided_slice %135 {offsets = [0, 0], sizes = [128, 1], strides = [1, 1]} : vector<128x2xf32> to vector<128x1xf32>
    %138 = vector.broadcast %136 : vector<1x1xf32> to vector<128x1xf32>
    %139 = arith.addf %138, %137 : vector<128x1xf32>
    %140 = vector.extract_strided_slice %104 {offsets = [1, 0], sizes = [1, 1], strides = [1, 1]} : vector<2x1xf32> to vector<1x1xf32>
    %141 = vector.extract_strided_slice %135 {offsets = [0, 1], sizes = [128, 1], strides = [1, 1]} : vector<128x2xf32> to vector<128x1xf32>
    %142 = vector.broadcast %140 : vector<1x1xf32> to vector<128x1xf32>
    %143 = arith.addf %142, %141 : vector<128x1xf32>
    %cst_59 = arith.constant 5.000000e-01 : f32
    %144 = vector.broadcast %cst_59 : f32 to vector<128x1xf32>
    %145 = arith.cmpf ogt, %143, %144 : vector<128x1xf32>
    %cst_60 = arith.constant 0xFF800000 : f32
    %146 = vector.broadcast %cst_60 : f32 to vector<128x1xf32>
    %147 = arith.select %145, %146, %139 : vector<128x1xi1>, vector<128x1xf32>
    %148 = arith.subf %118, %147 : vector<128x1xf32>
    %149 = tpu.iota {dimensions = array<i32: 0>} : vector<128x128xi32>
    %150 = vector.broadcast %1 : i32 to vector<128x128xi32>
    %151 = arith.addi %149, %150 : vector<128x128xi32>
    %152 = tpu.iota {dimensions = array<i32: 1>} : vector<128x128xi32>
    %153 = vector.broadcast %148 : vector<128x1xf32> to vector<128x128xf32>
    %154 = vector.broadcast %53 : vector<1x128xf32> to vector<128x128xf32>
    %155 = arith.addf %153, %154 : vector<128x128xf32>
    %c0_i32_61 = arith.constant 0 : i32
    %156 = vector.broadcast %c0_i32_61 : i32 to vector<128x128xi32>
    %157 = arith.addi %152, %156 : vector<128x128xi32>
    %158 = arith.cmpi sge, %157, %151 : vector<128x128xi32>
    %159 = vector.broadcast %21 : vector<1x128xi1> to vector<128x128xi1>
    %160 = arith.andi %158, %159 : vector<128x128xi1>
    %cst_62 = arith.constant 0xFF800000 : f32
    %161 = vector.broadcast %cst_62 : f32 to vector<128x128xf32>
    %162 = arith.select %160, %155, %161 : vector<128x128xi1>, vector<128x128xf32>
    %c0_63 = arith.constant 0 : index
    %c0_64 = arith.constant 0 : index
    %c0_65 = arith.constant 0 : index
    %163 = vector.load %arg8[%c0_63, %c0_64, %c0_65] : memref<1x128x256xf32, #tpu.memory_space<vmem>>, vector<1x128x128xf32>
    %164 = vector.shape_cast %163 : vector<1x128x128xf32> to vector<128x128xf32>
    %165 = vector.shape_cast %162 : vector<128x128xf32> to vector<1x128x128xf32>
    tpu.vector_store %arg8[%c0_63, %c0_64, %c0_65], %165 {strides = array<i32>} : memref<1x128x256xf32, #tpu.memory_space<vmem>>, vector<1x128x128xf32>,
    %166 = vector.broadcast %148 : vector<128x1xf32> to vector<128x128xf32>
    %167 = vector.broadcast %98 : vector<1x128xf32> to vector<128x128xf32>
    %168 = arith.addf %166, %167 : vector<128x128xf32>
    %c128_i32_66 = arith.constant 128 : i32
    %169 = vector.broadcast %c128_i32_66 : i32 to vector<128x128xi32>
    %170 = arith.addi %152, %169 : vector<128x128xi32>
    %171 = arith.cmpi sge, %170, %151 : vector<128x128xi32>
    %172 = vector.broadcast %66 : vector<1x128xi1> to vector<128x128xi1>
    %173 = arith.andi %171, %172 : vector<128x128xi1>
    %cst_67 = arith.constant 0xFF800000 : f32
    %174 = vector.broadcast %cst_67 : f32 to vector<128x128xf32>
    %175 = arith.select %173, %168, %174 : vector<128x128xi1>, vector<128x128xf32>
    %c0_68 = arith.constant 0 : index
    %c0_69 = arith.constant 0 : index
    %c128_70 = arith.constant 128 : index
    %176 = vector.load %arg8[%c0_68, %c0_69, %c128_70] : memref<1x128x256xf32, #tpu.memory_space<vmem>>, vector<1x128x128xf32>
    %177 = vector.shape_cast %176 : vector<1x128x128xf32> to vector<128x128xf32>
    %178 = vector.shape_cast %175 : vector<128x128xf32> to vector<1x128x128xf32>
    tpu.vector_store %arg8[%c0_68, %c0_69, %c128_70], %178 {strides = array<i32>} : memref<1x128x256xf32, #tpu.memory_space<vmem>>, vector<1x128x128xf32>,
    return
  }
  func.func @transform_0(%arg0: i32, %arg1: i32) -> (i32, i32, i32) {
    %c0_i32 = arith.constant 0 : i32
    %c0_i32_0 = arith.constant 0 : i32
    %c0_i32_1 = arith.constant 0 : i32
    return %arg0, %c0_i32, %c0_i32_0 : i32, i32, i32
  }
  func.func @transform_1(%arg0: i32, %arg1: i32) -> (i32, i32, i32) {
    %c0_i32 = arith.constant 0 : i32
    %c0_i32_0 = arith.constant 0 : i32
    return %arg0, %arg1, %c0_i32 : i32, i32, i32
  }
  func.func @transform_2(%arg0: i32, %arg1: i32) -> (i32, i32, i32) {
    %c0_i32 = arith.constant 0 : i32
    %c0_i32_0 = arith.constant 0 : i32
    %c0_i32_1 = arith.constant 0 : i32
    return %arg0, %c0_i32, %c0_i32_0 : i32, i32, i32
  }
  func.func @transform_3(%arg0: i32, %arg1: i32) -> (i32, i32) {
    %c0_i32 = arith.constant 0 : i32
    %c0_i32_0 = arith.constant 0 : i32
    %c0_i32_1 = arith.constant 0 : i32
    return %c0_i32, %c0_i32_0 : i32, i32
  }
  func.func @transform_4(%arg0: i32, %arg1: i32) -> (i32, i32) {
    %c0_i32 = arith.constant 0 : i32
    %c0_i32_0 = arith.constant 0 : i32
    %c0_i32_1 = arith.constant 0 : i32
    return %c0_i32, %c0_i32_0 : i32, i32
  }
  func.func @transform_5(%arg0: i32, %arg1: i32) -> i32 {
    %c0_i32 = arith.constant 0 : i32
    %c0_i32_0 = arith.constant 0 : i32
    return %c0_i32 : i32
  }
  func.func @transform_6(%arg0: i32, %arg1: i32) -> (i32, i32, i32) {
    %c0_i32 = arith.constant 0 : i32
    %c0_i32_0 = arith.constant 0 : i32
    return %arg0, %arg1, %c0_i32 : i32, i32, i32
  }
}

</mosaic_0001>

<llo_original>
// kernel: tpu_custom_call.1
$region0: #{tpu_custom_call.1}
  #allocation0 [shape = 'u32[]', space=smem, size = 0x4, offset = 0x4, fixed_abs, tag = 'smem constant byte address 0x4 - core index']
  #allocation1 [shape = 'u32[144,128]{1,0:T(1,128)}', space=vmem, size = 0x12000, scoped, tag = 'internal scratch']
  %s0 = inlined_call_operand.vmem [shape: f32[2,256,64], index: 0, kind: input, shape index: {}]
  %s1 = inlined_call_operand.vmem [shape: s32[2,256,1], index: 1, kind: input, shape index: {}]
  %s2 = inlined_call_operand.vmem [shape: s32[2,1,256], index: 2, kind: input, shape index: {}]
  %s3 = inlined_call_operand.vmem [shape: f32[64,2], index: 3, kind: input, shape index: {}]
  %s4 = inlined_call_operand.vmem [shape: f32[2,64], index: 4, kind: input, shape index: {}]
  %s5 = inlined_call_operand.vmem [shape: f32[3], index: 5, kind: input, shape index: {}]
  %s6 = inlined_call_operand.hbm [shape: f32[2,256,256], index: 6, kind: output, shape index: {}]
  %s7 = sld [smem:[#allocation0]]
  $region61: #{tpu_custom_call.1} parent=0
    _
  %s9 = ssub.s32 1, %s7
  %s10 = scalar_select 0, %s9, %s7
  $region1: #{tpu_custom_call.1} parent=0
    #allocation2 [shape = 'u8[512]{0}', space=smem, size = 0x200, scoped, tag = 'input window, operand 5, single buffered']
    #allocation3 [shape = 's32[2]{0}', space=sflag, size = 0x8, scoped, tag = 'scoped memory for tpu_custom_call.1']
    #allocation4 [shape = 's32[2]{0}', space=sflag, size = 0x8, scoped, tag = 'scoped memory for tpu_custom_call.1']
    #allocation5 [shape = 'u8[262144]{0}', space=vmem, size = 0x40000, scoped, tag = 'output window, operand 0']
    %11 = vsyncpa [#allocation4], 0
    %12 = vsyncpa [#allocation3], 0
    %s13 = scalar_lea.sflag [#allocation3], 1
    %14 = vsyncpa %s13, 0
    loop: start=0, step=1, limit=6
    $region2: #{tpu_custom_call.1} parent=1 // loop_pre_header
      _
    $region3: #{tpu_custom_call.1} parent=1 // loop_header
      %s16 = sphi 0, %s20
      %p17 = scmp.ge.s32.totalorder %s16, 6
      %s23 = sphi 0, %s35
      %s24 = sphi 0, %s31
      %s25 = sphi 0, %s23
      %s26 = sphi 0, %s24
      %s27 = sphi 0, %s25
      %s28 = sphi 0, %s26
      %s38 = sphi 0, %s40
      %s41 = sphi 0, %s38
      %s42 = sphi 0, %s41
      %s58 = sphi 0, %s42
      %s66 = sphi 0, %s68
      %s69 = sphi 0, %s66
      %s70 = sphi 0, %s69
      %s86 = sphi 0, %s70
      %s92 = sphi 0, %s94
      %s95 = sphi 0, %s92
      %s96 = sphi 0, %s95
      %s112 = sphi 0, %s96
      %s116 = sphi 0, %s116
      %s118 = sphi 0, %s116
      %s119 = sphi 0, %s118
      %s133 = sphi 0, %s119
      %s137 = sphi 0, %s137
      %s139 = sphi 0, %s137
      %s140 = sphi 0, %s139
      %s154 = sphi 0, %s140
      %s158 = sphi 0, %s158
      %s160 = sphi 0, %s158
      %s161 = sphi 0, %s160
      %s175 = sphi 0, %s161
      %s183 = sphi 0, %s185
      %s186 = sphi 0, %s183
      %s187 = sphi 0, %s186
      %s203 = sphi 0, %s187
    $region4: #{tpu_custom_call.1} parent=1 // loop_header_branch
      %19 = sbr.rel (%p17) target = $region8
    $region5: #{tpu_custom_call.1} parent=1 // loop_body
      %s21 = ssub.s32 %s16, 1
      %s22 = ssub.s32 %s16, 2
      %s29 = sadd.s32 1, %s24
      %p30 = scmp.ge.s32.totalorder %s29, 2
      %s31 = scalar_select %p30, 0, %s29
      %s32 = sadd.s32 1, %s23
      %s33 = scalar_select %p30, %s32, %s23
      %p34 = scmp.ge.s32.totalorder %s33, 2
      %s35 = scalar_select %p34, 0, %s33
      %s36 = ssub.s32 %s23, %s35
      %p37 = scmp.eq.s32.totalorder %s36, 0
      %s39 = sadd.s32 %s38, 1
      %s40 = scalar_select %p37, %s38, %s39
      %p43 = pneg %p37
      %p44 = scmp.eq.s32.totalorder %s16, 3
      %p45 = por %p43, %p44
      %p46 = scmp.ne.s32.totalorder %s38, %s41
      %p47 = scmp.eq.s32.totalorder %s16, 0
      %p48 = por %p46, %p47
      %p49 = scmp.ne.s32.totalorder %s38, %s41
      %p50 = scmp.eq.s32.totalorder %s21, 3
      %p51 = por %p49, %p50
      %p52 = scmp.ne.s32.totalorder %s41, %s42
      %p53 = scmp.eq.s32.totalorder %s21, 0
      %p54 = por %p52, %p53
      %p55 = scmp.ne.s32.totalorder %s41, %s42
      %p56 = scmp.eq.s32.totalorder %s22, 3
      %p57 = por %p55, %p56
      %p59 = scmp.ne.s32.totalorder %s42, %s58
      %p60 = scmp.eq.s32.totalorder %s22, 0
      %p61 = por %p59, %p60
      %s62 = ssub.s32 %s23, %s35
      %s63 = ssub.s32 %s24, %s31
      %s64 = sor.u32 %s62, %s63
      %p65 = scmp.eq.s32.totalorder %s64, 0
      %s67 = sadd.s32 %s66, 1
      %s68 = scalar_select %p65, %s66, %s67
      %p71 = pneg %p65
      %p72 = scmp.eq.s32.totalorder %s16, 3
      %p73 = por %p71, %p72
      %p74 = scmp.ne.s32.totalorder %s66, %s69
      %p75 = scmp.eq.s32.totalorder %s16, 0
      %p76 = por %p74, %p75
      %p77 = scmp.ne.s32.totalorder %s66, %s69
      %p78 = scmp.eq.s32.totalorder %s21, 3
      %p79 = por %p77, %p78
      %p80 = scmp.ne.s32.totalorder %s69, %s70
      %p81 = scmp.eq.s32.totalorder %s21, 0
      %p82 = por %p80, %p81
      %p83 = scmp.ne.s32.totalorder %s69, %s70
      %p84 = scmp.eq.s32.totalorder %s22, 3
      %p85 = por %p83, %p84
      %p87 = scmp.ne.s32.totalorder %s70, %s86
      %p88 = scmp.eq.s32.totalorder %s22, 0
      %p89 = por %p87, %p88
      %s90 = ssub.s32 %s23, %s35
      %p91 = scmp.eq.s32.totalorder %s90, 0
      %s93 = sadd.s32 %s92, 1
      %s94 = scalar_select %p91, %s92, %s93
      %p97 = pneg %p91
      %p98 = scmp.eq.s32.totalorder %s16, 3
      %p99 = por %p97, %p98
      %p100 = scmp.ne.s32.totalorder %s92, %s95
      %p101 = scmp.eq.s32.totalorder %s16, 0
      %p102 = por %p100, %p101
      %p103 = scmp.ne.s32.totalorder %s92, %s95
      %p104 = scmp.eq.s32.totalorder %s21, 3
      %p105 = por %p103, %p104
      %p106 = scmp.ne.s32.totalorder %s95, %s96
      %p107 = scmp.eq.s32.totalorder %s21, 0
      %p108 = por %p106, %p107
      %p109 = scmp.ne.s32.totalorder %s95, %s96
      %p110 = scmp.eq.s32.totalorder %s22, 3
      %p111 = por %p109, %p110
      %p113 = scmp.ne.s32.totalorder %s96, %s112
      %p114 = scmp.eq.s32.totalorder %s22, 0
      %p115 = por %p113, %p114
      %s117 = sadd.s32 %s116, 1
      %p120 = scmp.eq.s32.totalorder %s16, 3
      %p121 = scmp.ne.s32.totalorder %s116, %s118
      %p122 = scmp.eq.s32.totalorder %s16, 0
      %p123 = por %p121, %p122
      %p124 = scmp.ne.s32.totalorder %s116, %s118
      %p125 = scmp.eq.s32.totalorder %s21, 3
      %p126 = por %p124, %p125
      %p127 = scmp.ne.s32.totalorder %s118, %s119
      %p128 = scmp.eq.s32.totalorder %s21, 0
      %p129 = por %p127, %p128
      %p130 = scmp.ne.s32.totalorder %s118, %s119
      %p131 = scmp.eq.s32.totalorder %s22, 3
      %p132 = por %p130, %p131
      %p134 = scmp.ne.s32.totalorder %s119, %s133
      %p135 = scmp.eq.s32.totalorder %s22, 0
      %p136 = por %p134, %p135
      %s138 = sadd.s32 %s137, 1
      %p141 = scmp.eq.s32.totalorder %s16, 3
      %p142 = scmp.ne.s32.totalorder %s137, %s139
      %p143 = scmp.eq.s32.totalorder %s16, 0
      %p144 = por %p142, %p143
      %p145 = scmp.ne.s32.totalorder %s137, %s139
      %p146 = scmp.eq.s32.totalorder %s21, 3
      %p147 = por %p145, %p146
      %p148 = scmp.ne.s32.totalorder %s139, %s140
      %p149 = scmp.eq.s32.totalorder %s21, 0
      %p150 = por %p148, %p149
      %p151 = scmp.ne.s32.totalorder %s139, %s140
      %p152 = scmp.eq.s32.totalorder %s22, 3
      %p153 = por %p151, %p152
      %p155 = scmp.ne.s32.totalorder %s140, %s154
      %p156 = scmp.eq.s32.totalorder %s22, 0
      %p157 = por %p155, %p156
      %s159 = sadd.s32 %s158, 1
      %p162 = scmp.eq.s32.totalorder %s16, 3
      %p163 = scmp.ne.s32.totalorder %s158, %s160
      %p164 = scmp.eq.s32.totalorder %s16, 0
      %p165 = por %p163, %p164
      %p166 = scmp.ne.s32.totalorder %s158, %s160
      %p167 = scmp.eq.s32.totalorder %s21, 3
      %p168 = por %p166, %p167
      %p169 = scmp.ne.s32.totalorder %s160, %s161
      %p170 = scmp.eq.s32.totalorder %s21, 0
      %p171 = por %p169, %p170
      %p172 = scmp.ne.s32.totalorder %s160, %s161
      %p173 = scmp.eq.s32.totalorder %s22, 3
      %p174 = por %p172, %p173
      %p176 = scmp.ne.s32.totalorder %s161, %s175
      %p177 = scmp.eq.s32.totalorder %s22, 0
      %p178 = por %p176, %p177
      %s179 = ssub.s32 %s23, %s35
      %s180 = ssub.s32 %s24, %s31
      %s181 = sor.u32 %s179, %s180
      %p182 = scmp.eq.s32.totalorder %s181, 0
      %s184 = sadd.s32 %s183, 1
      %s185 = scalar_select %p182, %s183, %s184
      %p188 = pneg %p182
      %p189 = scmp.eq.s32.totalorder %s16, 3
      %p190 = por %p188, %p189
      %p191 = scmp.ne.s32.totalorder %s183, %s186
      %p192 = scmp.eq.s32.totalorder %s16, 0
      %p193 = por %p191, %p192
      %p194 = scmp.ne.s32.totalorder %s183, %s186
      %p195 = scmp.eq.s32.totalorder %s21, 3
      %p196 = por %p194, %p195
      %p197 = scmp.ne.s32.totalorder %s186, %s187
      %p198 = scmp.eq.s32.totalorder %s21, 0
      %p199 = por %p197, %p198
      %p200 = scmp.ne.s32.totalorder %s186, %s187
      %p201 = scmp.eq.s32.totalorder %s22, 3
      %p202 = por %p200, %p201
      %p204 = scmp.ne.s32.totalorder %s187, %s203
      %p205 = scmp.eq.s32.totalorder %s22, 0
      %p206 = por %p204, %p205
      %p207 = scmp.le.s32.totalorder 1, %s16
      %p208 = scmp.lt.s32.totalorder %s16, 5
      %p209 = pnand %p207, %p208
      %p210 = pneg %p209
      // Predicated region
      $region9: #{tpu_custom_call.1} parent=5 // pred_check
        _
      $region10: #{tpu_custom_call.1} parent=5 // pred_check_branch
        %212 = sbr.rel (%p209) target = $region12
      $region11: #{tpu_custom_call.1} parent=5 // pred_region
        %s213 = ssub.s32 %s16, 1
        // Predicated region
        $region13: #{tpu_custom_call.1} parent=11 // pred_check
          %p214 = pneg %p129
        $region14: #{tpu_custom_call.1} parent=11 // pred_check_branch
          %216 = sbr.rel (%p214) target = $region16
        $region15: #{tpu_custom_call.1} parent=11 // pred_region
          _
        $region16: #{tpu_custom_call.1} parent=11 // pred_fallthru
          _
        // Predicated region
        $region17: #{tpu_custom_call.1} parent=11 // pred_check
          %p217 = pneg %p150
        $region18: #{tpu_custom_call.1} parent=11 // pred_check_branch
          %219 = sbr.rel (%p217) target = $region20
        $region19: #{tpu_custom_call.1} parent=11 // pred_region
          _
        $region20: #{tpu_custom_call.1} parent=11 // pred_fallthru
          _
        // Predicated region
        $region21: #{tpu_custom_call.1} parent=11 // pred_check
          %p220 = pneg %p171
        $region22: #{tpu_custom_call.1} parent=11 // pred_check_branch
          %222 = sbr.rel (%p220) target = $region24
        $region23: #{tpu_custom_call.1} parent=11 // pred_region
          %s224 = ssub.s32 16, 16
          %225 = vsyncadd [#allocation4], %s224
          %s227 = sshll.u32 %s5, 4
          %s228 = int_to_ptr.vmem [resolvable:$true] %s227
          %230 = dma.vmem_to_smem %s228, 16, [#allocation2], [#allocation4]
        $region24: #{tpu_custom_call.1} parent=11 // pred_fallthru
          _
      $region12: #{tpu_custom_call.1} parent=5 // pred_fallthru
        _
      %p231 = scmp.lt.s32.totalorder %s16, 4
      // Predicated region
      $region25: #{tpu_custom_call.1} parent=5 // pred_check
        %p232 = pneg %p231
      $region26: #{tpu_custom_call.1} parent=5 // pred_check_branch
        %234 = sbr.rel (%p232) target = $region28
      $region27: #{tpu_custom_call.1} parent=5 // pred_region
        // Predicated region
        $region29: #{tpu_custom_call.1} parent=27 // pred_check
          %p235 = pneg %p48
        $region30: #{tpu_custom_call.1} parent=27 // pred_check_branch
          %237 = sbr.rel (%p235) target = $region32
        $region31: #{tpu_custom_call.1} parent=27 // pred_region
          %p238 = scmp.lt.s32.totalorder %s23, 1
          %s239 = scalar_select %p238, %s23, 1
          %s240 = smul.addr %s239, 32
          %s241 = smul.addr %s240, 8
          %s242 = scalar_lea.vmem %s0, %s241
        $region32: #{tpu_custom_call.1} parent=27 // pred_fallthru
          _
        // Predicated region
        $region33: #{tpu_custom_call.1} parent=27 // pred_check
          %p243 = pneg %p76
        $region34: #{tpu_custom_call.1} parent=27 // pred_check_branch
          %245 = sbr.rel (%p243) target = $region36
        $region35: #{tpu_custom_call.1} parent=27 // pred_region
          %s246 = smul.u32 16, %s24
          %p247 = scmp.lt.s32.totalorder %s23, 1
          %s248 = scalar_select %p247, %s23, 1
          %p249 = scmp.lt.s32.totalorder %s246, 31
          %s250 = scalar_select %p249, %s246, 31
          %s251 = smul.addr %s248, 32
          %s252 = sadd.s32 %s250, %s251
          %s253 = smul.addr %s252, 8
          %s254 = scalar_lea.vmem %s1, %s253
          %s255 = smul.u32 16, %s24
        $region36: #{tpu_custom_call.1} parent=27 // pred_fallthru
          _
        // Predicated region
        $region37: #{tpu_custom_call.1} parent=27 // pred_check
          %p256 = pneg %p102
        $region38: #{tpu_custom_call.1} parent=27 // pred_check_branch
          %258 = sbr.rel (%p256) target = $region40
        $region39: #{tpu_custom_call.1} parent=27 // pred_region
          %p259 = scmp.lt.s32.totalorder %s23, 1
          %s260 = scalar_select %p259, %s23, 1
          %s261 = smul.addr %s260, 2
          %s262 = scalar_lea.vmem %s2, %s261
        $region40: #{tpu_custom_call.1} parent=27 // pred_fallthru
          _
      $region28: #{tpu_custom_call.1} parent=5 // pred_fallthru
        _
      %p263 = scmp.le.s32.totalorder 1, %s16
      %p264 = scmp.lt.s32.totalorder %s16, 5
      %p265 = pnand %p263, %p264
      %p266 = pneg %p265
      // Predicated region
      $region41: #{tpu_custom_call.1} parent=5 // pred_check
        _
      $region42: #{tpu_custom_call.1} parent=5 // pred_check_branch
        %268 = sbr.rel (%p265) target = $region44
      $region43: #{tpu_custom_call.1} parent=5 // pred_region
        %s269 = ssub.s32 %s16, 1
        // Predicated region
        $region45: #{tpu_custom_call.1} parent=43 // pred_check
          %p270 = pneg %p171
        $region46: #{tpu_custom_call.1} parent=43 // pred_check_branch
          %272 = sbr.rel (%p270) target = $region48
        $region47: #{tpu_custom_call.1} parent=43 // pred_region
          %273 = dma.done [#allocation4], 16
        $region48: #{tpu_custom_call.1} parent=43 // pred_fallthru
          _
        %274 = sfence
        %p275 = scmp.lt.s32.totalorder %s25, 1
        %s276 = scalar_select %p275, %s25, 1
        %s277 = smul.addr %s276, 32
        %s278 = smul.addr %s277, 8
        %s279 = scalar_lea.vmem %s0, %s278
        %p280 = pneg %p54
        %p281 = pneg %p51
        %s282 = smul.u32 16, %s26
        %p283 = scmp.lt.s32.totalorder %s25, 1
        %s284 = scalar_select %p283, %s25, 1
        %p285 = scmp.lt.s32.totalorder %s282, 31
        %s286 = scalar_select %p285, %s282, 31
        %s287 = smul.addr %s284, 32
        %s288 = sadd.s32 %s286, %s287
        %s289 = smul.addr %s288, 8
        %s290 = scalar_lea.vmem %s1, %s289
        %p291 = pneg %p82
        %p292 = pneg %p79
        %p293 = scmp.lt.s32.totalorder %s25, 1
        %s294 = scalar_select %p293, %s25, 1
        %s295 = smul.addr %s294, 2
        %s296 = scalar_lea.vmem %s2, %s295
        %p297 = pneg %p108
        %p298 = pneg %p105
        %p299 = pneg %p129
        %p300 = pneg %p126
        %p301 = pneg %p150
        %p302 = pneg %p147
        %p303 = pneg %p171
        %p304 = pneg %p168
        %p305 = pneg %p199
        %p306 = pneg %p196
        %s307 = sand.u32 %s186, 1
        %s308 = scalar_lea.sflag [#allocation3], %s307
        %s309 = sand.u32 %s186, 1
        %s310 = smul.addr %s309, 256
        %s311 = scalar_lea.vmem [#allocation5], %s310
        %p312 = scmp.lt.s32.totalorder %s25, 1
        %s313 = scalar_select %p312, %s25, 1
        %s314 = smul.addr %s313, 32
        %s315 = smul.addr %s314, 8
        %s316 = scalar_lea.vmem %s0, %s315
        %s317 = smul.u32 16, %s26
        %p318 = scmp.lt.s32.totalorder %s25, 1
        %s319 = scalar_select %p318, %s25, 1
        %p320 = scmp.lt.s32.totalorder %s317, 31
        %s321 = scalar_select %p320, %s317, 31
        %s322 = smul.addr %s319, 32
        %s323 = sadd.s32 %s321, %s322
        %s324 = smul.addr %s323, 8
        %s325 = scalar_lea.vmem %s1, %s324
        %s326 = smul.u32 16, %s26
        %p327 = scmp.lt.s32.totalorder %s25, 1
        %s328 = scalar_select %p327, %s25, 1
        %s329 = smul.addr %s328, 2
        %s330 = scalar_lea.vmem %s2, %s329
        %s331 = smul.u32 16, %s26
        %s332 = smul.u32 %s26, 128
        %s333 = sld [smem:[#allocation2]]
        %s334 = sld [smem:[#allocation2 + $0x1]]
        %s335 = sld [smem:[#allocation2 + $0x2]]
        %v336 = vlaneseq
        %v337 = vshrl.u32 %v336, 7
        %v338 = vadd.s32 %v337, 8
        %v339 = vadd.s32 %v337, 16
        %v340 = vadd.s32 %v337, 24
        %v341 = vadd.s32 %v337, 32
        %v342 = vadd.s32 %v337, 40
        %v343 = vadd.s32 %v337, 48
        %v344 = vadd.s32 %v337, 56
        %v345 = vadd.s32 %v337, 64
        %v346 = vadd.s32 %v337, 72
        %v347 = vadd.s32 %v337, 80
        %v348 = vadd.s32 %v337, 88
        %v349 = vadd.s32 %v337, 96
        %v350 = vadd.s32 %v337, 104
        %v351 = vadd.s32 %v337, 112
        %v352 = vadd.s32 %v337, 120
        %v353 = vlaneseq
        %v354 = vand.u32 %v353, 127
        %vm355 = vcmp.le.s32.totalorder %v337, %v354
        %vm356 = vcmp.le.s32.totalorder %v338, %v354
        %vm357 = vcmp.le.s32.totalorder %v339, %v354
        %vm358 = vcmp.le.s32.totalorder %v340, %v354
        %vm359 = vcmp.le.s32.totalorder %v341, %v354
        %vm360 = vcmp.le.s32.totalorder %v342, %v354
        %vm361 = vcmp.le.s32.totalorder %v343, %v354
        %vm362 = vcmp.le.s32.totalorder %v344, %v354
        %vm363 = vcmp.le.s32.totalorder %v345, %v354
        %vm364 = vcmp.le.s32.totalorder %v346, %v354
        %vm365 = vcmp.le.s32.totalorder %v347, %v354
        %vm366 = vcmp.le.s32.totalorder %v348, %v354
        %vm367 = vcmp.le.s32.totalorder %v349, %v354
        %vm368 = vcmp.le.s32.totalorder %v350, %v354
        %vm369 = vcmp.le.s32.totalorder %v351, %v354
        %vm370 = vcmp.le.s32.totalorder %v352, %v354
        %v371 = vsel %vm355, 1.0, 0.0
        %v372 = vsel %vm356, 1.0, 0.0
        %v373 = vsel %vm357, 1.0, 0.0
        %v374 = vsel %vm358, 1.0, 0.0
        %v375 = vsel %vm359, 1.0, 0.0
        %v376 = vsel %vm360, 1.0, 0.0
        %v377 = vsel %vm361, 1.0, 0.0
        %v378 = vsel %vm362, 1.0, 0.0
        %v379 = vsel %vm363, 1.0, 0.0
        %v380 = vsel %vm364, 1.0, 0.0
        %v381 = vsel %vm365, 1.0, 0.0
        %v382 = vsel %vm366, 1.0, 0.0
        %v383 = vsel %vm367, 1.0, 0.0
        %v384 = vsel %vm368, 1.0, 0.0
        %v385 = vsel %vm369, 1.0, 0.0
        %v386 = vsel %vm370, 1.0, 0.0
        %v387 = vsub.f32 1.0, %v371
        %v388 = vsub.f32 1.0, %v372
        %v389 = vsub.f32 1.0, %v373
        %v390 = vsub.f32 1.0, %v374
        %v391 = vsub.f32 1.0, %v375
        %v392 = vsub.f32 1.0, %v376
        %v393 = vsub.f32 1.0, %v377
        %v394 = vsub.f32 1.0, %v378
        %v395 = vsub.f32 1.0, %v379
        %v396 = vsub.f32 1.0, %v380
        %v397 = vsub.f32 1.0, %v381
        %v398 = vsub.f32 1.0, %v382
        %v399 = vsub.f32 1.0, %v383
        %v400 = vsub.f32 1.0, %v384
        %v401 = vsub.f32 1.0, %v385
        %v402 = vsub.f32 1.0, %v386
        %v403 = vld [vmem:[%s316] sm:$0xff]
        %v404 = vld [vmem:[%s316 + $0x8] sm:$0xff]
        %v405 = vld [vmem:[%s316 + $0x10] sm:$0xff]
        %v406 = vld [vmem:[%s316 + $0x18] sm:$0xff]
        %v407 = vld [vmem:[%s316 + $0x20] sm:$0xff]
        %v408 = vld [vmem:[%s316 + $0x28] sm:$0xff]
        %v409 = vld [vmem:[%s316 + $0x30] sm:$0xff]
        %v410 = vld [vmem:[%s316 + $0x38] sm:$0xff]
        %v411 = vld [vmem:[%s316 + $0x40] sm:$0xff]
        %v412 = vld [vmem:[%s316 + $0x48] sm:$0xff]
        %v413 = vld [vmem:[%s316 + $0x50] sm:$0xff]
        %v414 = vld [vmem:[%s316 + $0x58] sm:$0xff]
        %v415 = vld [vmem:[%s316 + $0x60] sm:$0xff]
        %v416 = vld [vmem:[%s316 + $0x68] sm:$0xff]
        %v417 = vld [vmem:[%s316 + $0x70] sm:$0xff]
        %v418 = vld [vmem:[%s316 + $0x78] sm:$0xff]
        %v419 = vld [vmem:[%s330] sm:$0x1]
        %vm420 = vcmp.ne.s32.totalorder %v419, 0
        %v421 = vld [vmem:[%s4] sm:$0x3]
        %vm422 = vcmask 523264
        %v424 = vsel %vm422, %v421, 0
        %v427 = vsel %vm422, %v403, 0
        %v430 = vsel %vm422, %v404, 0
        %v433 = vsel %vm422, %v405, 0
        %v436 = vsel %vm422, %v406, 0
        %v439 = vsel %vm422, %v407, 0
        %v442 = vsel %vm422, %v408, 0
        %v445 = vsel %vm422, %v409, 0
        %v448 = vsel %vm422, %v410, 0
        %v451 = vsel %vm422, %v411, 0
        %v454 = vsel %vm422, %v412, 0
        %v457 = vsel %vm422, %v413, 0
        %v460 = vsel %vm422, %v414, 0
        %v463 = vsel %vm422, %v415, 0
        %v466 = vsel %vm422, %v416, 0
        %v469 = vsel %vm422, %v417, 0
        %v472 = vsel %vm422, %v418, 0
        %474 = vmatprep.subr.mxu0 0.0
        %475 = vmatpush1.xpose.msra.mxu0 %v427
        %476 = vmatprep.subr.mxu0 0.0
        %477 = vmatpush1.xpose.msra.mxu0 %v430
        %478 = vmatprep.subr.mxu0 0.0
        %479 = vmatpush1.xpose.msra.mxu0 %v433
        %480 = vmatprep.subr.mxu0 0.0
        %481 = vmatpush1.xpose.msra.mxu0 %v436
        %482 = vmatprep.subr.mxu0 0.0
        %483 = vmatpush1.xpose.msra.mxu0 %v439
        %484 = vmatprep.subr.mxu0 0.0
        %485 = vmatpush1.xpose.msra.mxu0 %v442
        %486 = vmatprep.subr.mxu0 0.0
        %487 = vmatpush1.xpose.msra.mxu0 %v445
        %488 = vmatprep.subr.mxu0 0.0
        %489 = vmatpush1.xpose.msra.mxu0 %v448
        %490 = vmatprep.subr.mxu0 0.0
        %491 = vmatpush1.xpose.msra.mxu0 %v451
        %492 = vmatprep.subr.mxu0 0.0
        %493 = vmatpush1.xpose.msra.mxu0 %v454
        %494 = vmatprep.subr.mxu0 0.0
        %495 = vmatpush1.xpose.msra.mxu0 %v457
        %496 = vmatprep.subr.mxu0 0.0
        %497 = vmatpush1.xpose.msra.mxu0 %v460
        %498 = vmatprep.subr.mxu0 0.0
        %499 = vmatpush1.xpose.msra.mxu0 %v463
        %500 = vmatprep.subr.mxu0 0.0
        %501 = vmatpush1.xpose.msra.mxu0 %v466
        %502 = vmatprep.subr.mxu0 0.0
        %503 = vmatpush1.xpose.msra.mxu0 %v469
        %504 = vmatprep.subr.mxu0 0.0
        %505 = vmatpush1.xpose.msra.mxu0 %v472
        %506 = vmatprep.subr.mxu0 0.0
        %507 = vmatpush1.xpose.msra.mxu0 0.0
        %508 = vmatprep.subr.mxu0 0.0
        %509 = vmatpush1.xpose.msra.mxu0 0.0
        %510 = vmatprep.subr.mxu0 0.0
        %511 = vmatpush1.xpose.msra.mxu0 0.0
        %512 = vmatprep.subr.mxu0 0.0
        %513 = vmatpush1.xpose.msra.mxu0 0.0
        %514 = vmatprep.subr.mxu0 0.0
        %515 = vmatpush1.xpose.msra.mxu0 0.0
        %516 = vmatprep.subr.mxu0 0.0
        %517 = vmatpush1.xpose.msra.mxu0 0.0
        %518 = vmatprep.subr.mxu0 0.0
        %519 = vmatpush1.xpose.msra.mxu0 0.0
        %520 = vmatprep.subr.mxu0 0.0
        %521 = vmatpush1.xpose.msra.mxu0 0.0
        %522 = vmatprep.subr.mxu0 0.0
        %523 = vmatpush1.xpose.msra.mxu0 0.0
        %524 = vmatprep.subr.mxu0 0.0
        %525 = vmatpush1.xpose.msra.mxu0 0.0
        %526 = vmatprep.subr.mxu0 0.0
        %527 = vmatpush1.xpose.msra.mxu0 0.0
        %528 = vmatprep.subr.mxu0 0.0
        %529 = vmatpush1.xpose.msra.mxu0 0.0
        %530 = vmatprep.subr.mxu0 0.0
        %531 = vmatpush1.xpose.msra.mxu0 0.0
        %532 = vmatprep.subr.mxu0 0.0
        %533 = vmatpush1.xpose.msra.mxu0 0.0
        %534 = vmatprep.subr.mxu0 0.0
        %535 = vmatpush1.xpose.msra.mxu0 0.0
        %536 = vmatprep.subr.mxu0 0.0
        %537 = vmatpush1.xpose.msra.mxu0 0.0
        %538 = vmatprep.mubr.f32.mxu0 0.0
        %539 = vmatmul.mubr.f32.gmra.mrb[0].mxu0 %v424
        %v540 = vpop.f32.mrb[0].mxu0
        %v541 = vadd.f32 0.0, %v540
        %v542 = vpop.f32.mrb[0].mxu0
        %543 = vdwg.mxu0
        %v544 = vstv %s334
        %v545 = vadd.f32 %v541, %v544
        %v546 = vsel %vm420, %v545, -inf
        %v547 = vstv %s335
        %v548 = vadd.f32 %v541, %v547
        %v551 = vunpack.c.l.s4 1966171168
        %v552 = vunpack.c.0.s8 %v551
        %v553 = vlaneseq
        %v554 = vshrl.u32 %v553, 7
        %v555 = vsub.s32 %v552, %v554
        %v556 = vrot.slane %v548, %v555
        %v557 = vcombine.high %v556, %v556
        %v559 = vunpack.c.l.s4 1966171168
        %v560 = vunpack.c.0.s8 %v559
        %v561 = vlaneseq
        %v562 = vshrl.u32 %v561, 7
        %v563 = vsub.s32 %v560, %v562
        %v564 = vrot.slane %v557, %v563
        %v566 = vsel %vm420, %v564, 0.0
        %v567 = vsel %vm420, 0.0, 1.0
        %vm568 = vcmp.eq.s32.totalorder %v337, 0
        %v570 = vlaneseq
        %v571 = vshrl.u32 %v570, 7
        %v572 = vsub.s32 0, %v571
        %v573 = vrot.slane %v566, %v572
        %v576 = vlaneseq
        %v577 = vshrl.u32 %v576, 7
        %v578 = vsub.s32 0, %v577
        %v579 = vrot.slane %v567, %v578
        %v581 = vsel %vm568, %v573, %v579
        %582 = vmatprep.subr.mxu0 0.0
        %583 = vmatpush1.msra.mxu0 %v371
        %584 = vmatprep.subr.mxu0 0.0
        %585 = vmatpush1.msra.mxu0 %v372
        %586 = vmatprep.subr.mxu0 0.0
        %587 = vmatpush1.msra.mxu0 %v373
        %588 = vmatprep.subr.mxu0 0.0
        %589 = vmatpush1.msra.mxu0 %v374
        %590 = vmatprep.subr.mxu0 0.0
        %591 = vmatpush1.msra.mxu0 %v375
        %592 = vmatprep.subr.mxu0 0.0
        %593 = vmatpush1.msra.mxu0 %v376
        %594 = vmatprep.subr.mxu0 0.0
        %595 = vmatpush1.msra.mxu0 %v377
        %596 = vmatprep.subr.mxu0 0.0
        %597 = vmatpush1.msra.mxu0 %v378
        %598 = vmatprep.subr.mxu0 0.0
        %599 = vmatpush1.msra.mxu0 %v379
        %600 = vmatprep.subr.mxu0 0.0
        %601 = vmatpush1.msra.mxu0 %v380
        %602 = vmatprep.subr.mxu0 0.0
        %603 = vmatpush1.msra.mxu0 %v381
        %604 = vmatprep.subr.mxu0 0.0
        %605 = vmatpush1.msra.mxu0 %v382
        %606 = vmatprep.subr.mxu0 0.0
        %607 = vmatpush1.msra.mxu0 %v383
        %608 = vmatprep.subr.mxu0 0.0
        %609 = vmatpush1.msra.mxu0 %v384
        %610 = vmatprep.subr.mxu0 0.0
        %611 = vmatpush1.msra.mxu0 %v385
        %612 = vmatprep.subr.mxu0 0.0
        %613 = vmatpush1.msra.mxu0 %v386
        %614 = vmatprep.subr.mxu0 0.0
        %615 = vmatpush1.msra.mxu0 0.0
        %616 = vmatprep.subr.mxu0 0.0
        %617 = vmatpush1.msra.mxu0 0.0
        %618 = vmatprep.subr.mxu0 0.0
        %619 = vmatpush1.msra.mxu0 0.0
        %620 = vmatprep.subr.mxu0 0.0
        %621 = vmatpush1.msra.mxu0 0.0
        %622 = vmatprep.subr.mxu0 0.0
        %623 = vmatpush1.msra.mxu0 0.0
        %624 = vmatprep.subr.mxu0 0.0
        %625 = vmatpush1.msra.mxu0 0.0
        %626 = vmatprep.subr.mxu0 0.0
        %627 = vmatpush1.msra.mxu0 0.0
        %628 = vmatprep.subr.mxu0 0.0
        %629 = vmatpush1.msra.mxu0 0.0
        %630 = vmatprep.subr.mxu0 0.0
        %631 = vmatpush1.msra.mxu0 0.0
        %632 = vmatprep.subr.mxu0 0.0
        %633 = vmatpush1.msra.mxu0 0.0
        %634 = vmatprep.subr.mxu0 0.0
        %635 = vmatpush1.msra.mxu0 0.0
        %636 = vmatprep.subr.mxu0 0.0
        %637 = vmatpush1.msra.mxu0 0.0
        %638 = vmatprep.subr.mxu0 0.0
        %639 = vmatpush1.msra.mxu0 0.0
        %640 = vmatprep.subr.mxu0 0.0
        %641 = vmatpush1.msra.mxu0 0.0
        %642 = vmatprep.subr.mxu0 0.0
        %643 = vmatpush1.msra.mxu0 0.0
        %644 = vmatprep.subr.mxu0 0.0
        %645 = vmatpush1.msra.mxu0 0.0
        %646 = vmatprep.mubr.f32.mxu0 0.0
        %647 = vmatmul.mubr.f32.gmra.mrb[0].mxu0 %v581
        %v648 = vpop.f32.mrb[0].mxu0
        %v649 = vadd.f32 0.0, %v648
        %v650 = vpop.f32.mrb[0].mxu0
        %651 = vdwg.mxu0
        %vm652 = vcmp.gt.f32.partialorder %v649, 0.5
        %v654 = vrot.slane %v649, 7
        %v656 = vsel %vm652, -inf, %v654
        %v659 = vunpack.c.l.s4 1966171168
        %v660 = vunpack.c.0.s8 %v659
        %v661 = vlaneseq
        %v662 = vshrl.u32 %v661, 7
        %v663 = vsub.s32 %v660, %v662
        %v664 = vrot.slane %v656, %v663
        %v665 = vcombine.high %v664, %v664
        %v667 = vunpack.c.l.s4 1966171168
        %v668 = vunpack.c.0.s8 %v667
        %v669 = vlaneseq
        %v670 = vshrl.u32 %v669, 7
        %v671 = vsub.s32 %v668, %v670
        %v672 = vrot.slane %v665, %v671
        %v674 = vadd.f32 %v546, %v672
        %vm675 = vcmask 1041408
        %v676 = vsel %vm675, %v581, 0.0
        %677 = vadd.xlane.f32.xlu0 %v676
        %v678 = vpop.xlane.xlu0 %677
        %v679 = vadd.f32 %v678, 0.0
        %p680 = scmp.gt.s32.totalorder %s332, 0
        %s681 = scalar_select %p680, 1, 0
        %v682 = vstv %s681
        %vm683 = vcmp.eq.s32.totalorder %v682, 1
        %v684 = vsel %vm683, %v678, 0.0
        %v685 = vadd.f32 %v684, 0.0
        %v686 = vld [vmem:[%s316 + $0x80] sm:$0xff]
        %v687 = vld [vmem:[%s316 + $0x88] sm:$0xff]
        %v688 = vld [vmem:[%s316 + $0x90] sm:$0xff]
        %v689 = vld [vmem:[%s316 + $0x98] sm:$0xff]
        %v690 = vld [vmem:[%s316 + $0xa0] sm:$0xff]
        %v691 = vld [vmem:[%s316 + $0xa8] sm:$0xff]
        %v692 = vld [vmem:[%s316 + $0xb0] sm:$0xff]
        %v693 = vld [vmem:[%s316 + $0xb8] sm:$0xff]
        %v694 = vld [vmem:[%s316 + $0xc0] sm:$0xff]
        %v695 = vld [vmem:[%s316 + $0xc8] sm:$0xff]
        %v696 = vld [vmem:[%s316 + $0xd0] sm:$0xff]
        %v697 = vld [vmem:[%s316 + $0xd8] sm:$0xff]
        %v698 = vld [vmem:[%s316 + $0xe0] sm:$0xff]
        %v699 = vld [vmem:[%s316 + $0xe8] sm:$0xff]
        %v700 = vld [vmem:[%s316 + $0xf0] sm:$0xff]
        %v701 = vld [vmem:[%s316 + $0xf8] sm:$0xff]
        %v702 = vld [vmem:[%s330 + $0x1] sm:$0x1]
        %vm703 = vcmp.ne.s32.totalorder %v702, 0
        %v705 = vsel %vm422, %v686, 0
        %v708 = vsel %vm422, %v687, 0
        %v711 = vsel %vm422, %v688, 0
        %v714 = vsel %vm422, %v689, 0
        %v717 = vsel %vm422, %v690, 0
        %v720 = vsel %vm422, %v691, 0
        %v723 = vsel %vm422, %v692, 0
        %v726 = vsel %vm422, %v693, 0
        %v729 = vsel %vm422, %v694, 0
        %v732 = vsel %vm422, %v695, 0
        %v735 = vsel %vm422, %v696, 0
        %v738 = vsel %vm422, %v697, 0
        %v741 = vsel %vm422, %v698, 0
        %v744 = vsel %vm422, %v699, 0
        %v747 = vsel %vm422, %v700, 0
        %v750 = vsel %vm422, %v701, 0
        %752 = vmatprep.subr.mxu0 0.0
        %753 = vmatpush1.xpose.msra.mxu0 %v705
        %754 = vmatprep.subr.mxu0 0.0
        %755 = vmatpush1.xpose.msra.mxu0 %v708
        %756 = vmatprep.subr.mxu0 0.0
        %757 = vmatpush1.xpose.msra.mxu0 %v711
        %758 = vmatprep.subr.mxu0 0.0
        %759 = vmatpush1.xpose.msra.mxu0 %v714
        %760 = vmatprep.subr.mxu0 0.0
        %761 = vmatpush1.xpose.msra.mxu0 %v717
        %762 = vmatprep.subr.mxu0 0.0
        %763 = vmatpush1.xpose.msra.mxu0 %v720
        %764 = vmatprep.subr.mxu0 0.0
        %765 = vmatpush1.xpose.msra.mxu0 %v723
        %766 = vmatprep.subr.mxu0 0.0
        %767 = vmatpush1.xpose.msra.mxu0 %v726
        %768 = vmatprep.subr.mxu0 0.0
        %769 = vmatpush1.xpose.msra.mxu0 %v729
        %770 = vmatprep.subr.mxu0 0.0
        %771 = vmatpush1.xpose.msra.mxu0 %v732
        %772 = vmatprep.subr.mxu0 0.0
        %773 = vmatpush1.xpose.msra.mxu0 %v735
        %774 = vmatprep.subr.mxu0 0.0
        %775 = vmatpush1.xpose.msra.mxu0 %v738
        %776 = vmatprep.subr.mxu0 0.0
        %777 = vmatpush1.xpose.msra.mxu0 %v741
        %778 = vmatprep.subr.mxu0 0.0
        %779 = vmatpush1.xpose.msra.mxu0 %v744
        %780 = vmatprep.subr.mxu0 0.0
        %781 = vmatpush1.xpose.msra.mxu0 %v747
        %782 = vmatprep.subr.mxu0 0.0
        %783 = vmatpush1.xpose.msra.mxu0 %v750
        %784 = vmatprep.subr.mxu0 0.0
        %785 = vmatpush1.xpose.msra.mxu0 0.0
        %786 = vmatprep.subr.mxu0 0.0
        %787 = vmatpush1.xpose.msra.mxu0 0.0
        %788 = vmatprep.subr.mxu0 0.0
        %789 = vmatpush1.xpose.msra.mxu0 0.0
        %790 = vmatprep.subr.mxu0 0.0
        %791 = vmatpush1.xpose.msra.mxu0 0.0
        %792 = vmatprep.subr.mxu0 0.0
        %793 = vmatpush1.xpose.msra.mxu0 0.0
        %794 = vmatprep.subr.mxu0 0.0
        %795 = vmatpush1.xpose.msra.mxu0 0.0
        %796 = vmatprep.subr.mxu0 0.0
        %797 = vmatpush1.xpose.msra.mxu0 0.0
        %798 = vmatprep.subr.mxu0 0.0
        %799 = vmatpush1.xpose.msra.mxu0 0.0
        %800 = vmatprep.subr.mxu0 0.0
        %801 = vmatpush1.xpose.msra.mxu0 0.0
        %802 = vmatprep.subr.mxu0 0.0
        %803 = vmatpush1.xpose.msra.mxu0 0.0
        %804 = vmatprep.subr.mxu0 0.0
        %805 = vmatpush1.xpose.msra.mxu0 0.0
        %806 = vmatprep.subr.mxu0 0.0
        %807 = vmatpush1.xpose.msra.mxu0 0.0
        %808 = vmatprep.subr.mxu0 0.0
        %809 = vmatpush1.xpose.msra.mxu0 0.0
        %810 = vmatprep.subr.mxu0 0.0
        %811 = vmatpush1.xpose.msra.mxu0 0.0
        %812 = vmatprep.subr.mxu0 0.0
        %813 = vmatpush1.xpose.msra.mxu0 0.0
        %814 = vmatprep.subr.mxu0 0.0
        %815 = vmatpush1.xpose.msra.mxu0 0.0
        %816 = vmatprep.mubr.f32.mxu0 0.0
        %817 = vmatmul.mubr.f32.gmra.mrb[0].mxu0 %v424
        %v818 = vpop.f32.mrb[0].mxu0
        %v819 = vadd.f32 0.0, %v818
        %v820 = vpop.f32.mrb[0].mxu0
        %821 = vdwg.mxu0
        %v822 = vadd.f32 %v819, %v544
        %v823 = vsel %vm703, %v822, -inf
        %v824 = vadd.f32 %v819, %v547
        %v827 = vunpack.c.l.s4 1966171168
        %v828 = vunpack.c.0.s8 %v827
        %v829 = vlaneseq
        %v830 = vshrl.u32 %v829, 7
        %v831 = vsub.s32 %v828, %v830
        %v832 = vrot.slane %v824, %v831
        %v833 = vcombine.high %v832, %v832
        %v835 = vunpack.c.l.s4 1966171168
        %v836 = vunpack.c.0.s8 %v835
        %v837 = vlaneseq
        %v838 = vshrl.u32 %v837, 7
        %v839 = vsub.s32 %v836, %v838
        %v840 = vrot.slane %v833, %v839
        %v842 = vsel %vm703, %v840, 0.0
        %v843 = vsel %vm703, 0.0, 1.0
        %v845 = vlaneseq
        %v846 = vshrl.u32 %v845, 7
        %v847 = vsub.s32 0, %v846
        %v848 = vrot.slane %v842, %v847
        %v851 = vlaneseq
        %v852 = vshrl.u32 %v851, 7
        %v853 = vsub.s32 0, %v852
        %v854 = vrot.slane %v843, %v853
        %v856 = vsel %vm568, %v848, %v854
        %857 = vmatprep.subr.mxu0 0.0
        %858 = vmatpush1.msra.mxu0 %v371
        %859 = vmatprep.subr.mxu0 0.0
        %860 = vmatpush1.msra.mxu0 %v372
        %861 = vmatprep.subr.mxu0 0.0
        %862 = vmatpush1.msra.mxu0 %v373
        %863 = vmatprep.subr.mxu0 0.0
        %864 = vmatpush1.msra.mxu0 %v374
        %865 = vmatprep.subr.mxu0 0.0
        %866 = vmatpush1.msra.mxu0 %v375
        %867 = vmatprep.subr.mxu0 0.0
        %868 = vmatpush1.msra.mxu0 %v376
        %869 = vmatprep.subr.mxu0 0.0
        %870 = vmatpush1.msra.mxu0 %v377
        %871 = vmatprep.subr.mxu0 0.0
        %872 = vmatpush1.msra.mxu0 %v378
        %873 = vmatprep.subr.mxu0 0.0
        %874 = vmatpush1.msra.mxu0 %v379
        %875 = vmatprep.subr.mxu0 0.0
        %876 = vmatpush1.msra.mxu0 %v380
        %877 = vmatprep.subr.mxu0 0.0
        %878 = vmatpush1.msra.mxu0 %v381
        %879 = vmatprep.subr.mxu0 0.0
        %880 = vmatpush1.msra.mxu0 %v382
        %881 = vmatprep.subr.mxu0 0.0
        %882 = vmatpush1.msra.mxu0 %v383
        %883 = vmatprep.subr.mxu0 0.0
        %884 = vmatpush1.msra.mxu0 %v384
        %885 = vmatprep.subr.mxu0 0.0
        %886 = vmatpush1.msra.mxu0 %v385
        %887 = vmatprep.subr.mxu0 0.0
        %888 = vmatpush1.msra.mxu0 %v386
        %889 = vmatprep.subr.mxu0 0.0
        %890 = vmatpush1.msra.mxu0 0.0
        %891 = vmatprep.subr.mxu0 0.0
        %892 = vmatpush1.msra.mxu0 0.0
        %893 = vmatprep.subr.mxu0 0.0
        %894 = vmatpush1.msra.mxu0 0.0
        %895 = vmatprep.subr.mxu0 0.0
        %896 = vmatpush1.msra.mxu0 0.0
        %897 = vmatprep.subr.mxu0 0.0
        %898 = vmatpush1.msra.mxu0 0.0
        %899 = vmatprep.subr.mxu0 0.0
        %900 = vmatpush1.msra.mxu0 0.0
        %901 = vmatprep.subr.mxu0 0.0
        %902 = vmatpush1.msra.mxu0 0.0
        %903 = vmatprep.subr.mxu0 0.0
        %904 = vmatpush1.msra.mxu0 0.0
        %905 = vmatprep.subr.mxu0 0.0
        %906 = vmatpush1.msra.mxu0 0.0
        %907 = vmatprep.subr.mxu0 0.0
        %908 = vmatpush1.msra.mxu0 0.0
        %909 = vmatprep.subr.mxu0 0.0
        %910 = vmatpush1.msra.mxu0 0.0
        %911 = vmatprep.subr.mxu0 0.0
        %912 = vmatpush1.msra.mxu0 0.0
        %913 = vmatprep.subr.mxu0 0.0
        %914 = vmatpush1.msra.mxu0 0.0
        %915 = vmatprep.subr.mxu0 0.0
        %916 = vmatpush1.msra.mxu0 0.0
        %917 = vmatprep.subr.mxu0 0.0
        %918 = vmatpush1.msra.mxu0 0.0
        %919 = vmatprep.subr.mxu0 0.0
        %920 = vmatpush1.msra.mxu0 0.0
        %921 = vmatprep.mubr.f32.mxu0 0.0
        %922 = vmatmul.mubr.f32.gmra.mrb[0].mxu0 %v856
        %v923 = vpop.f32.mrb[0].mxu0
        %v924 = vadd.f32 0.0, %v923
        %v925 = vpop.f32.mrb[0].mxu0
        %926 = vdwg.mxu0
        %v927 = vadd.f32 %v679, %v924
        %vm928 = vcmp.gt.f32.partialorder %v927, 0.5
        %v930 = vrot.slane %v927, 7
        %v932 = vsel %vm928, -inf, %v930
        %v935 = vunpack.c.l.s4 1966171168
        %v936 = vunpack.c.0.s8 %v935
        %v937 = vlaneseq
        %v938 = vshrl.u32 %v937, 7
        %v939 = vsub.s32 %v936, %v938
        %v940 = vrot.slane %v932, %v939
        %v941 = vcombine.high %v940, %v940
        %v943 = vunpack.c.l.s4 1966171168
        %v944 = vunpack.c.0.s8 %v943
        %v945 = vlaneseq
        %v946 = vshrl.u32 %v945, 7
        %v947 = vsub.s32 %v944, %v946
        %v948 = vrot.slane %v941, %v947
        %v950 = vadd.f32 %v823, %v948
        %v951 = vsel %vm675, %v856, 0.0
        %952 = vadd.xlane.f32.xlu0 %v951
        %v953 = vpop.xlane.xlu0 %952
        %p954 = scmp.gt.s32.totalorder %s332, 128
        %s955 = scalar_select %p954, 1, 0
        %v956 = vstv %s955
        %vm957 = vcmp.eq.s32.totalorder %v956, 1
        %v958 = vsel %vm957, %v953, 0.0
        %v959 = vadd.f32 %v685, %v958
        %s960 = scalar_lea.vmem %s316, %s332
        %v961 = vld [vmem:[%s960] sm:$0xff]
        %v962 = vld [vmem:[%s960 + $0x8] sm:$0xff]
        %v963 = vld [vmem:[%s960 + $0x10] sm:$0xff]
        %v964 = vld [vmem:[%s960 + $0x18] sm:$0xff]
        %v965 = vld [vmem:[%s960 + $0x20] sm:$0xff]
        %v966 = vld [vmem:[%s960 + $0x28] sm:$0xff]
        %v967 = vld [vmem:[%s960 + $0x30] sm:$0xff]
        %v968 = vld [vmem:[%s960 + $0x38] sm:$0xff]
        %v969 = vld [vmem:[%s960 + $0x40] sm:$0xff]
        %v970 = vld [vmem:[%s960 + $0x48] sm:$0xff]
        %v971 = vld [vmem:[%s960 + $0x50] sm:$0xff]
        %v972 = vld [vmem:[%s960 + $0x58] sm:$0xff]
        %v973 = vld [vmem:[%s960 + $0x60] sm:$0xff]
        %v974 = vld [vmem:[%s960 + $0x68] sm:$0xff]
        %v975 = vld [vmem:[%s960 + $0x70] sm:$0xff]
        %v976 = vld [vmem:[%s960 + $0x78] sm:$0xff]
        %v977 = vld [vmem:[%s325] sm:$0xff]
        %v978 = vld [vmem:[%s325 + $0x8] sm:$0xff]
        %v979 = vld [vmem:[%s325 + $0x10] sm:$0xff]
        %v980 = vld [vmem:[%s325 + $0x18] sm:$0xff]
        %v981 = vld [vmem:[%s325 + $0x20] sm:$0xff]
        %v982 = vld [vmem:[%s325 + $0x28] sm:$0xff]
        %v983 = vld [vmem:[%s325 + $0x30] sm:$0xff]
        %v984 = vld [vmem:[%s325 + $0x38] sm:$0xff]
        %v985 = vld [vmem:[%s325 + $0x40] sm:$0xff]
        %v986 = vld [vmem:[%s325 + $0x48] sm:$0xff]
        %v987 = vld [vmem:[%s325 + $0x50] sm:$0xff]
        %v988 = vld [vmem:[%s325 + $0x58] sm:$0xff]
        %v989 = vld [vmem:[%s325 + $0x60] sm:$0xff]
        %v990 = vld [vmem:[%s325 + $0x68] sm:$0xff]
        %v991 = vld [vmem:[%s325 + $0x70] sm:$0xff]
        %v992 = vld [vmem:[%s325 + $0x78] sm:$0xff]
        %vm993 = vcmp.ne.s32.totalorder %v977, 0
        %vm994 = vcmp.ne.s32.totalorder %v978, 0
        %vm995 = vcmp.ne.s32.totalorder %v979, 0
        %vm996 = vcmp.ne.s32.totalorder %v980, 0
        %vm997 = vcmp.ne.s32.totalorder %v981, 0
        %vm998 = vcmp.ne.s32.totalorder %v982, 0
        %vm999 = vcmp.ne.s32.totalorder %v983, 0
        %vm1000 = vcmp.ne.s32.totalorder %v984, 0
        %vm1001 = vcmp.ne.s32.totalorder %v985, 0
        %vm1002 = vcmp.ne.s32.totalorder %v986, 0
        %vm1003 = vcmp.ne.s32.totalorder %v987, 0
        %vm1004 = vcmp.ne.s32.totalorder %v988, 0
        %vm1005 = vcmp.ne.s32.totalorder %v989, 0
        %vm1006 = vcmp.ne.s32.totalorder %v990, 0
        %vm1007 = vcmp.ne.s32.totalorder %v991, 0
        %vm1008 = vcmp.ne.s32.totalorder %v992, 0
        %v1009 = vld [vmem:[%s3] sm:$0xff]
        %v1010 = vld [vmem:[%s3 + $0x8] sm:$0xff]
        %v1011 = vld [vmem:[%s3 + $0x10] sm:$0xff]
        %v1012 = vld [vmem:[%s3 + $0x18] sm:$0xff]
        %v1013 = vld [vmem:[%s3 + $0x20] sm:$0xff]
        %v1014 = vld [vmem:[%s3 + $0x28] sm:$0xff]
        %v1015 = vld [vmem:[%s3 + $0x30] sm:$0xff]
        %v1016 = vld [vmem:[%s3 + $0x38] sm:$0xff]
        %v1018 = vsel %vm422, %v961, 0
        %v1021 = vsel %vm422, %v962, 0
        %v1024 = vsel %vm422, %v963, 0
        %v1027 = vsel %vm422, %v964, 0
        %v1030 = vsel %vm422, %v965, 0
        %v1033 = vsel %vm422, %v966, 0
        %v1036 = vsel %vm422, %v967, 0
        %v1039 = vsel %vm422, %v968, 0
        %v1042 = vsel %vm422, %v969, 0
        %v1045 = vsel %vm422, %v970, 0
        %v1048 = vsel %vm422, %v971, 0
        %v1051 = vsel %vm422, %v972, 0
        %v1054 = vsel %vm422, %v973, 0
        %v1057 = vsel %vm422, %v974, 0
        %v1060 = vsel %vm422, %v975, 0
        %v1063 = vsel %vm422, %v976, 0
        %1065 = vmatprep.subr.mxu0 0.0
        %1066 = vmatpush1.msra.mxu0 %v1009
        %1067 = vmatprep.subr.mxu0 0.0
        %1068 = vmatpush1.msra.mxu0 %v1010
        %1069 = vmatprep.subr.mxu0 0.0
        %1070 = vmatpush1.msra.mxu0 %v1011
        %1071 = vmatprep.subr.mxu0 0.0
        %1072 = vmatpush1.msra.mxu0 %v1012
        %1073 = vmatprep.subr.mxu0 0.0
        %1074 = vmatpush1.msra.mxu0 %v1013
        %1075 = vmatprep.subr.mxu0 0.0
        %1076 = vmatpush1.msra.mxu0 %v1014
        %1077 = vmatprep.subr.mxu0 0.0
        %1078 = vmatpush1.msra.mxu0 %v1015
        %1079 = vmatprep.subr.mxu0 0.0
        %1080 = vmatpush1.msra.mxu0 %v1016
        %1081 = vmatprep.subr.mxu0 0.0
        %1082 = vmatpush1.msra.mxu0 0.0
        %1083 = vmatprep.subr.mxu0 0.0
        %1084 = vmatpush1.msra.mxu0 0.0
        %1085 = vmatprep.subr.mxu0 0.0
        %1086 = vmatpush1.msra.mxu0 0.0
        %1087 = vmatprep.subr.mxu0 0.0
        %1088 = vmatpush1.msra.mxu0 0.0
        %1089 = vmatprep.subr.mxu0 0.0
        %1090 = vmatpush1.msra.mxu0 0.0
        %1091 = vmatprep.subr.mxu0 0.0
        %1092 = vmatpush1.msra.mxu0 0.0
        %1093 = vmatprep.subr.mxu0 0.0
        %1094 = vmatpush1.msra.mxu0 0.0
        %1095 = vmatprep.subr.mxu0 0.0
        %1096 = vmatpush1.msra.mxu0 0.0
        %1097 = vmatprep.subr.mxu0 0.0
        %1098 = vmatpush1.msra.mxu0 0.0
        %1099 = vmatprep.subr.mxu0 0.0
        %1100 = vmatpush1.msra.mxu0 0.0
        %1101 = vmatprep.subr.mxu0 0.0
        %1102 = vmatpush1.msra.mxu0 0.0
        %1103 = vmatprep.subr.mxu0 0.0
        %1104 = vmatpush1.msra.mxu0 0.0
        %1105 = vmatprep.subr.mxu0 0.0
        %1106 = vmatpush1.msra.mxu0 0.0
        %1107 = vmatprep.subr.mxu0 0.0
        %1108 = vmatpush1.msra.mxu0 0.0
        %1109 = vmatprep.subr.mxu0 0.0
        %1110 = vmatpush1.msra.mxu0 0.0
        %1111 = vmatprep.subr.mxu0 0.0
        %1112 = vmatpush1.msra.mxu0 0.0
        %1113 = vmatprep.subr.mxu0 0.0
        %1114 = vmatpush1.msra.mxu0 0.0
        %1115 = vmatprep.subr.mxu0 0.0
        %1116 = vmatpush1.msra.mxu0 0.0
        %1117 = vmatprep.subr.mxu0 0.0
        %1118 = vmatpush1.msra.mxu0 0.0
        %1119 = vmatprep.subr.mxu0 0.0
        %1120 = vmatpush1.msra.mxu0 0.0
        %1121 = vmatprep.subr.mxu0 0.0
        %1122 = vmatpush1.msra.mxu0 0.0
        %1123 = vmatprep.subr.mxu0 0.0
        %1124 = vmatpush1.msra.mxu0 0.0
        %1125 = vmatprep.subr.mxu0 0.0
        %1126 = vmatpush1.msra.mxu0 0.0
        %1127 = vmatprep.subr.mxu0 0.0
        %1128 = vmatpush1.msra.mxu0 0.0
        %1129 = vmatprep.mubr.f32.mxu0 0.0
        %1130 = vmatmul.mubr.f32.gmra.mrb[0].mxu0 %v1018
        %v1131 = vpop.f32.mrb[0].mxu0
        %v1132 = vadd.f32 0.0, %v1131
        %v1133 = vpop.f32.mrb[0].mxu0
        %1134 = vmatprep.mubr.f32.mxu0 0.0
        %1135 = vmatmul.mubr.f32.gmra.mrb[0].mxu0 %v1021
        %v1136 = vpop.f32.mrb[0].mxu0
        %v1137 = vadd.f32 0.0, %v1136
        %v1138 = vpop.f32.mrb[0].mxu0
        %1139 = vmatprep.mubr.f32.mxu0 0.0
        %1140 = vmatmul.mubr.f32.gmra.mrb[0].mxu0 %v1024
        %v1141 = vpop.f32.mrb[0].mxu0
        %v1142 = vadd.f32 0.0, %v1141
        %v1143 = vpop.f32.mrb[0].mxu0
        %1144 = vmatprep.mubr.f32.mxu0 0.0
        %1145 = vmatmul.mubr.f32.gmra.mrb[0].mxu0 %v1027
        %v1146 = vpop.f32.mrb[0].mxu0
        %v1147 = vadd.f32 0.0, %v1146
        %v1148 = vpop.f32.mrb[0].mxu0
        %1149 = vmatprep.mubr.f32.mxu0 0.0
        %1150 = vmatmul.mubr.f32.gmra.mrb[0].mxu0 %v1030
        %v1151 = vpop.f32.mrb[0].mxu0
        %v1152 = vadd.f32 0.0, %v1151
        %v1153 = vpop.f32.mrb[0].mxu0
        %1154 = vmatprep.mubr.f32.mxu0 0.0
        %1155 = vmatmul.mubr.f32.gmra.mrb[0].mxu0 %v1033
        %v1156 = vpop.f32.mrb[0].mxu0
        %v1157 = vadd.f32 0.0, %v1156
        %v1158 = vpop.f32.mrb[0].mxu0
        %1159 = vmatprep.mubr.f32.mxu0 0.0
        %1160 = vmatmul.mubr.f32.gmra.mrb[0].mxu0 %v1036
        %v1161 = vpop.f32.mrb[0].mxu0
        %v1162 = vadd.f32 0.0, %v1161
        %v1163 = vpop.f32.mrb[0].mxu0
        %1164 = vmatprep.mubr.f32.mxu0 0.0
        %1165 = vmatmul.mubr.f32.gmra.mrb[0].mxu0 %v1039
        %v1166 = vpop.f32.mrb[0].mxu0
        %v1167 = vadd.f32 0.0, %v1166
        %v1168 = vpop.f32.mrb[0].mxu0
        %1169 = vmatprep.mubr.f32.mxu0 0.0
        %1170 = vmatmul.mubr.f32.gmra.mrb[0].mxu0 %v1042
        %v1171 = vpop.f32.mrb[0].mxu0
        %v1172 = vadd.f32 0.0, %v1171
        %v1173 = vpop.f32.mrb[0].mxu0
        %1174 = vmatprep.mubr.f32.mxu0 0.0
        %1175 = vmatmul.mubr.f32.gmra.mrb[0].mxu0 %v1045
        %v1176 = vpop.f32.mrb[0].mxu0
        %v1177 = vadd.f32 0.0, %v1176
        %v1178 = vpop.f32.mrb[0].mxu0
        %1179 = vmatprep.mubr.f32.mxu0 0.0
        %1180 = vmatmul.mubr.f32.gmra.mrb[0].mxu0 %v1048
        %v1181 = vpop.f32.mrb[0].mxu0
        %v1182 = vadd.f32 0.0, %v1181
        %v1183 = vpop.f32.mrb[0].mxu0
        %1184 = vmatprep.mubr.f32.mxu0 0.0
        %1185 = vmatmul.mubr.f32.gmra.mrb[0].mxu0 %v1051
        %v1186 = vpop.f32.mrb[0].mxu0
        %v1187 = vadd.f32 0.0, %v1186
        %v1188 = vpop.f32.mrb[0].mxu0
        %1189 = vmatprep.mubr.f32.mxu0 0.0
        %1190 = vmatmul.mubr.f32.gmra.mrb[0].mxu0 %v1054
        %v1191 = vpop.f32.mrb[0].mxu0
        %v1192 = vadd.f32 0.0, %v1191
        %v1193 = vpop.f32.mrb[0].mxu0
        %1194 = vmatprep.mubr.f32.mxu0 0.0
        %1195 = vmatmul.mubr.f32.gmra.mrb[0].mxu0 %v1057
        %v1196 = vpop.f32.mrb[0].mxu0
        %v1197 = vadd.f32 0.0, %v1196
        %v1198 = vpop.f32.mrb[0].mxu0
        %1199 = vmatprep.mubr.f32.mxu0 0.0
        %1200 = vmatmul.mubr.f32.gmra.mrb[0].mxu0 %v1060
        %v1201 = vpop.f32.mrb[0].mxu0
        %v1202 = vadd.f32 0.0, %v1201
        %v1203 = vpop.f32.mrb[0].mxu0
        %1204 = vmatprep.mubr.f32.mxu0 0.0
        %1205 = vmatmul.mubr.f32.gmra.mrb[0].mxu0 %v1063
        %v1206 = vpop.f32.mrb[0].mxu0
        %v1207 = vadd.f32 0.0, %v1206
        %v1208 = vpop.f32.mrb[0].mxu0
        %1209 = vdwg.mxu0
        %v1210 = vstv %s333
        %v1211 = vadd.f32 %v1132, %v1210
        %v1212 = vadd.f32 %v1137, %v1210
        %v1213 = vadd.f32 %v1142, %v1210
        %v1214 = vadd.f32 %v1147, %v1210
        %v1215 = vadd.f32 %v1152, %v1210
        %v1216 = vadd.f32 %v1157, %v1210
        %v1217 = vadd.f32 %v1162, %v1210
        %v1218 = vadd.f32 %v1167, %v1210
        %v1219 = vadd.f32 %v1172, %v1210
        %v1220 = vadd.f32 %v1177, %v1210
        %v1221 = vadd.f32 %v1182, %v1210
        %v1222 = vadd.f32 %v1187, %v1210
        %v1223 = vadd.f32 %v1192, %v1210
        %v1224 = vadd.f32 %v1197, %v1210
        %v1225 = vadd.f32 %v1202, %v1210
        %v1226 = vadd.f32 %v1207, %v1210
        %v1227 = vsel %vm993, %v1211, -inf
        %v1228 = vsel %vm994, %v1212, -inf
        %v1229 = vsel %vm995, %v1213, -inf
        %v1230 = vsel %vm996, %v1214, -inf
        %v1231 = vsel %vm997, %v1215, -inf
        %v1232 = vsel %vm998, %v1216, -inf
        %v1233 = vsel %vm999, %v1217, -inf
        %v1234 = vsel %vm1000, %v1218, -inf
        %v1235 = vsel %vm1001, %v1219, -inf
        %v1236 = vsel %vm1002, %v1220, -inf
        %v1237 = vsel %vm1003, %v1221, -inf
        %v1238 = vsel %vm1004, %v1222, -inf
        %v1239 = vsel %vm1005, %v1223, -inf
        %v1240 = vsel %vm1006, %v1224, -inf
        %v1241 = vsel %vm1007, %v1225, -inf
        %v1242 = vsel %vm1008, %v1226, -inf
        %v1243 = vadd.f32 %v1132, %v547
        %v1244 = vadd.f32 %v1137, %v547
        %v1245 = vadd.f32 %v1142, %v547
        %v1246 = vadd.f32 %v1147, %v547
        %v1247 = vadd.f32 %v1152, %v547
        %v1248 = vadd.f32 %v1157, %v547
        %v1249 = vadd.f32 %v1162, %v547
        %v1250 = vadd.f32 %v1167, %v547
        %v1251 = vadd.f32 %v1172, %v547
        %v1252 = vadd.f32 %v1177, %v547
        %v1253 = vadd.f32 %v1182, %v547
        %v1254 = vadd.f32 %v1187, %v547
        %v1255 = vadd.f32 %v1192, %v547
        %v1256 = vadd.f32 %v1197, %v547
        %v1257 = vadd.f32 %v1202, %v547
        %v1258 = vadd.f32 %v1207, %v547
        %1275 = vrot.lane.b32.xlu0 %v1243, 127
        %v1276 = vpop.permute.xlu0 %1275
        %1277 = vrot.lane.b32.xlu0 %v1244, 127
        %v1278 = vpop.permute.xlu0 %1277
        %1279 = vrot.lane.b32.xlu0 %v1245, 127
        %v1280 = vpop.permute.xlu0 %1279
        %1281 = vrot.lane.b32.xlu0 %v1246, 127
        %v1282 = vpop.permute.xlu0 %1281
        %1283 = vrot.lane.b32.xlu0 %v1247, 127
        %v1284 = vpop.permute.xlu0 %1283
        %1285 = vrot.lane.b32.xlu0 %v1248, 127
        %v1286 = vpop.permute.xlu0 %1285
        %1287 = vrot.lane.b32.xlu0 %v1249, 127
        %v1288 = vpop.permute.xlu0 %1287
        %1289 = vrot.lane.b32.xlu0 %v1250, 127
        %v1290 = vpop.permute.xlu0 %1289
        %1291 = vrot.lane.b32.xlu0 %v1251, 127
        %v1292 = vpop.permute.xlu0 %1291
        %1293 = vrot.lane.b32.xlu0 %v1252, 127
        %v1294 = vpop.permute.xlu0 %1293
        %1295 = vrot.lane.b32.xlu0 %v1253, 127
        %v1296 = vpop.permute.xlu0 %1295
        %1297 = vrot.lane.b32.xlu0 %v1254, 127
        %v1298 = vpop.permute.xlu0 %1297
        %1299 = vrot.lane.b32.xlu0 %v1255, 127
        %v1300 = vpop.permute.xlu0 %1299
        %1301 = vrot.lane.b32.xlu0 %v1256, 127
        %v1302 = vpop.permute.xlu0 %1301
        %1303 = vrot.lane.b32.xlu0 %v1257, 127
        %v1304 = vpop.permute.xlu0 %1303
        %1305 = vrot.lane.b32.xlu0 %v1258, 127
        %v1306 = vpop.permute.xlu0 %1305
        %v1323 = vsel %vm993, %v1276, 0.0
        %v1324 = vsel %vm994, %v1278, 0.0
        %v1325 = vsel %vm995, %v1280, 0.0
        %v1326 = vsel %vm996, %v1282, 0.0
        %v1327 = vsel %vm997, %v1284, 0.0
        %v1328 = vsel %vm998, %v1286, 0.0
        %v1329 = vsel %vm999, %v1288, 0.0
        %v1330 = vsel %vm1000, %v1290, 0.0
        %v1331 = vsel %vm1001, %v1292, 0.0
        %v1332 = vsel %vm1002, %v1294, 0.0
        %v1333 = vsel %vm1003, %v1296, 0.0
        %v1334 = vsel %vm1004, %v1298, 0.0
        %v1335 = vsel %vm1005, %v1300, 0.0
        %v1336 = vsel %vm1006, %v1302, 0.0
        %v1337 = vsel %vm1007, %v1304, 0.0
        %v1338 = vsel %vm1008, %v1306, 0.0
        %v1339 = vsel %vm993, 0.0, 1.0
        %v1340 = vsel %vm994, 0.0, 1.0
        %v1341 = vsel %vm995, 0.0, 1.0
        %v1342 = vsel %vm996, 0.0, 1.0
        %v1343 = vsel %vm997, 0.0, 1.0
        %v1344 = vsel %vm998, 0.0, 1.0
        %v1345 = vsel %vm999, 0.0, 1.0
        %v1346 = vsel %vm1000, 0.0, 1.0
        %v1347 = vsel %vm1001, 0.0, 1.0
        %v1348 = vsel %vm1002, 0.0, 1.0
        %v1349 = vsel %vm1003, 0.0, 1.0
        %v1350 = vsel %vm1004, 0.0, 1.0
        %v1351 = vsel %vm1005, 0.0, 1.0
        %v1352 = vsel %vm1006, 0.0, 1.0
        %v1353 = vsel %vm1007, 0.0, 1.0
        %v1354 = vsel %vm1008, 0.0, 1.0
        %vm1355 = vcmp.eq.s32.totalorder %v354, 0
        %1357 = vset.pattern.permute.xlu0 0
        %1358 = vperm.xlu0 %1357, %v1323
        %v1359 = vpop.permute.xlu0 %1358
        %1362 = vset.pattern.permute.xlu0 0
        %1363 = vperm.xlu0 %1362, %v1324
        %v1364 = vpop.permute.xlu0 %1363
        %1367 = vset.pattern.permute.xlu0 0
        %1368 = vperm.xlu0 %1367, %v1325
        %v1369 = vpop.permute.xlu0 %1368
        %1372 = vset.pattern.permute.xlu0 0
        %1373 = vperm.xlu0 %1372, %v1326
        %v1374 = vpop.permute.xlu0 %1373
        %1377 = vset.pattern.permute.xlu0 0
        %1378 = vperm.xlu0 %1377, %v1327
        %v1379 = vpop.permute.xlu0 %1378
        %1382 = vset.pattern.permute.xlu0 0
        %1383 = vperm.xlu0 %1382, %v1328
        %v1384 = vpop.permute.xlu0 %1383
        %1387 = vset.pattern.permute.xlu0 0
        %1388 = vperm.xlu0 %1387, %v1329
        %v1389 = vpop.permute.xlu0 %1388
        %1392 = vset.pattern.permute.xlu0 0
        %1393 = vperm.xlu0 %1392, %v1330
        %v1394 = vpop.permute.xlu0 %1393
        %1397 = vset.pattern.permute.xlu0 0
        %1398 = vperm.xlu0 %1397, %v1331
        %v1399 = vpop.permute.xlu0 %1398
        %1402 = vset.pattern.permute.xlu0 0
        %1403 = vperm.xlu0 %1402, %v1332
        %v1404 = vpop.permute.xlu0 %1403
        %1407 = vset.pattern.permute.xlu0 0
        %1408 = vperm.xlu0 %1407, %v1333
        %v1409 = vpop.permute.xlu0 %1408
        %1412 = vset.pattern.permute.xlu0 0
        %1413 = vperm.xlu0 %1412, %v1334
        %v1414 = vpop.permute.xlu0 %1413
        %1417 = vset.pattern.permute.xlu0 0
        %1418 = vperm.xlu0 %1417, %v1335
        %v1419 = vpop.permute.xlu0 %1418
        %1422 = vset.pattern.permute.xlu0 0
        %1423 = vperm.xlu0 %1422, %v1336
        %v1424 = vpop.permute.xlu0 %1423
        %1427 = vset.pattern.permute.xlu0 0
        %1428 = vperm.xlu0 %1427, %v1337
        %v1429 = vpop.permute.xlu0 %1428
        %1432 = vset.pattern.permute.xlu0 0
        %1433 = vperm.xlu0 %1432, %v1338
        %v1434 = vpop.permute.xlu0 %1433
        %1437 = vset.pattern.permute.xlu0 0
        %1438 = vperm.xlu0 %1437, %v1339
        %v1439 = vpop.permute.xlu0 %1438
        %1442 = vset.pattern.permute.xlu0 0
        %1443 = vperm.xlu0 %1442, %v1340
        %v1444 = vpop.permute.xlu0 %1443
        %1447 = vset.pattern.permute.xlu0 0
        %1448 = vperm.xlu0 %1447, %v1341
        %v1449 = vpop.permute.xlu0 %1448
        %1452 = vset.pattern.permute.xlu0 0
        %1453 = vperm.xlu0 %1452, %v1342
        %v1454 = vpop.permute.xlu0 %1453
        %1457 = vset.pattern.permute.xlu0 0
        %1458 = vperm.xlu0 %1457, %v1343
        %v1459 = vpop.permute.xlu0 %1458
        %1462 = vset.pattern.permute.xlu0 0
        %1463 = vperm.xlu0 %1462, %v1344
        %v1464 = vpop.permute.xlu0 %1463
        %1467 = vset.pattern.permute.xlu0 0
        %1468 = vperm.xlu0 %1467, %v1345
        %v1469 = vpop.permute.xlu0 %1468
        %1472 = vset.pattern.permute.xlu0 0
        %1473 = vperm.xlu0 %1472, %v1346
        %v1474 = vpop.permute.xlu0 %1473
        %1477 = vset.pattern.permute.xlu0 0
        %1478 = vperm.xlu0 %1477, %v1347
        %v1479 = vpop.permute.xlu0 %1478
        %1482 = vset.pattern.permute.xlu0 0
        %1483 = vperm.xlu0 %1482, %v1348
        %v1484 = vpop.permute.xlu0 %1483
        %1487 = vset.pattern.permute.xlu0 0
        %1488 = vperm.xlu0 %1487, %v1349
        %v1489 = vpop.permute.xlu0 %1488
        %1492 = vset.pattern.permute.xlu0 0
        %1493 = vperm.xlu0 %1492, %v1350
        %v1494 = vpop.permute.xlu0 %1493
        %1497 = vset.pattern.permute.xlu0 0
        %1498 = vperm.xlu0 %1497, %v1351
        %v1499 = vpop.permute.xlu0 %1498
        %1502 = vset.pattern.permute.xlu0 0
        %1503 = vperm.xlu0 %1502, %v1352
        %v1504 = vpop.permute.xlu0 %1503
        %1507 = vset.pattern.permute.xlu0 0
        %1508 = vperm.xlu0 %1507, %v1353
        %v1509 = vpop.permute.xlu0 %1508
        %1512 = vset.pattern.permute.xlu0 0
        %1513 = vperm.xlu0 %1512, %v1354
        %v1514 = vpop.permute.xlu0 %1513
        %v1516 = vsel %vm1355, %v1359, %v1439
        %v1517 = vsel %vm1355, %v1364, %v1444
        %v1518 = vsel %vm1355, %v1369, %v1449
        %v1519 = vsel %vm1355, %v1374, %v1454
        %v1520 = vsel %vm1355, %v1379, %v1459
        %v1521 = vsel %vm1355, %v1384, %v1464
        %v1522 = vsel %vm1355, %v1389, %v1469
        %v1523 = vsel %vm1355, %v1394, %v1474
        %v1524 = vsel %vm1355, %v1399, %v1479
        %v1525 = vsel %vm1355, %v1404, %v1484
        %v1526 = vsel %vm1355, %v1409, %v1489
        %v1527 = vsel %vm1355, %v1414, %v1494
        %v1528 = vsel %vm1355, %v1419, %v1499
        %v1529 = vsel %vm1355, %v1424, %v1504
        %v1530 = vsel %vm1355, %v1429, %v1509
        %v1531 = vsel %vm1355, %v1434, %v1514
        %1532 = vmatprep.subr.mxu0 0.0
        %1533 = vmatpush1.msra.mxu0 %v1516
        %1534 = vmatprep.subr.mxu0 0.0
        %1535 = vmatpush1.msra.mxu0 %v1517
        %1536 = vmatprep.subr.mxu0 0.0
        %1537 = vmatpush1.msra.mxu0 %v1518
        %1538 = vmatprep.subr.mxu0 0.0
        %1539 = vmatpush1.msra.mxu0 %v1519
        %1540 = vmatprep.subr.mxu0 0.0
        %1541 = vmatpush1.msra.mxu0 %v1520
        %1542 = vmatprep.subr.mxu0 0.0
        %1543 = vmatpush1.msra.mxu0 %v1521
        %1544 = vmatprep.subr.mxu0 0.0
        %1545 = vmatpush1.msra.mxu0 %v1522
        %1546 = vmatprep.subr.mxu0 0.0
        %1547 = vmatpush1.msra.mxu0 %v1523
        %1548 = vmatprep.subr.mxu0 0.0
        %1549 = vmatpush1.msra.mxu0 %v1524
        %1550 = vmatprep.subr.mxu0 0.0
        %1551 = vmatpush1.msra.mxu0 %v1525
        %1552 = vmatprep.subr.mxu0 0.0
        %1553 = vmatpush1.msra.mxu0 %v1526
        %1554 = vmatprep.subr.mxu0 0.0
        %1555 = vmatpush1.msra.mxu0 %v1527
        %1556 = vmatprep.subr.mxu0 0.0
        %1557 = vmatpush1.msra.mxu0 %v1528
        %1558 = vmatprep.subr.mxu0 0.0
        %1559 = vmatpush1.msra.mxu0 %v1529
        %1560 = vmatprep.subr.mxu0 0.0
        %1561 = vmatpush1.msra.mxu0 %v1530
        %1562 = vmatprep.subr.mxu0 0.0
        %1563 = vmatpush1.msra.mxu0 %v1531
        %1564 = vmatprep.subr.mxu0 0.0
        %1565 = vmatpush1.msra.mxu0 0.0
        %1566 = vmatprep.subr.mxu0 0.0
        %1567 = vmatpush1.msra.mxu0 0.0
        %1568 = vmatprep.subr.mxu0 0.0
        %1569 = vmatpush1.msra.mxu0 0.0
        %1570 = vmatprep.subr.mxu0 0.0
        %1571 = vmatpush1.msra.mxu0 0.0
        %1572 = vmatprep.subr.mxu0 0.0
        %1573 = vmatpush1.msra.mxu0 0.0
        %1574 = vmatprep.subr.mxu0 0.0
        %1575 = vmatpush1.msra.mxu0 0.0
        %1576 = vmatprep.subr.mxu0 0.0
        %1577 = vmatpush1.msra.mxu0 0.0
        %1578 = vmatprep.subr.mxu0 0.0
        %1579 = vmatpush1.msra.mxu0 0.0
        %1580 = vmatprep.subr.mxu0 0.0
        %1581 = vmatpush1.msra.mxu0 0.0
        %1582 = vmatprep.subr.mxu0 0.0
        %1583 = vmatpush1.msra.mxu0 0.0
        %1584 = vmatprep.subr.mxu0 0.0
        %1585 = vmatpush1.msra.mxu0 0.0
        %1586 = vmatprep.subr.mxu0 0.0
        %1587 = vmatpush1.msra.mxu0 0.0
        %1588 = vmatprep.subr.mxu0 0.0
        %1589 = vmatpush1.msra.mxu0 0.0
        %1590 = vmatprep.subr.mxu0 0.0
        %1591 = vmatpush1.msra.mxu0 0.0
        %1592 = vmatprep.subr.mxu0 0.0
        %1593 = vmatpush1.msra.mxu0 0.0
        %1594 = vmatprep.subr.mxu0 0.0
        %1595 = vmatpush1.msra.mxu0 0.0
        %1596 = vmatprep.mubr.f32.mxu0 0.0
        %1597 = vmatmul.mubr.f32.gmra.mrb[0].mxu0 %v387
        %v1598 = vpop.f32.mrb[0].mxu0
        %v1599 = vadd.f32 0.0, %v1598
        %v1600 = vpop.f32.mrb[0].mxu0
        %1601 = vmatprep.mubr.f32.mxu0 0.0
        %1602 = vmatmul.mubr.f32.gmra.mrb[0].mxu0 %v388
        %v1603 = vpop.f32.mrb[0].mxu0
        %v1604 = vadd.f32 0.0, %v1603
        %v1605 = vpop.f32.mrb[0].mxu0
        %1606 = vmatprep.mubr.f32.mxu0 0.0
        %1607 = vmatmul.mubr.f32.gmra.mrb[0].mxu0 %v389
        %v1608 = vpop.f32.mrb[0].mxu0
        %v1609 = vadd.f32 0.0, %v1608
        %v1610 = vpop.f32.mrb[0].mxu0
        %1611 = vmatprep.mubr.f32.mxu0 0.0
        %1612 = vmatmul.mubr.f32.gmra.mrb[0].mxu0 %v390
        %v1613 = vpop.f32.mrb[0].mxu0
        %v1614 = vadd.f32 0.0, %v1613
        %v1615 = vpop.f32.mrb[0].mxu0
        %1616 = vmatprep.mubr.f32.mxu0 0.0
        %1617 = vmatmul.mubr.f32.gmra.mrb[0].mxu0 %v391
        %v1618 = vpop.f32.mrb[0].mxu0
        %v1619 = vadd.f32 0.0, %v1618
        %v1620 = vpop.f32.mrb[0].mxu0
        %1621 = vmatprep.mubr.f32.mxu0 0.0
        %1622 = vmatmul.mubr.f32.gmra.mrb[0].mxu0 %v392
        %v1623 = vpop.f32.mrb[0].mxu0
        %v1624 = vadd.f32 0.0, %v1623
        %v1625 = vpop.f32.mrb[0].mxu0
        %1626 = vmatprep.mubr.f32.mxu0 0.0
        %1627 = vmatmul.mubr.f32.gmra.mrb[0].mxu0 %v393
        %v1628 = vpop.f32.mrb[0].mxu0
        %v1629 = vadd.f32 0.0, %v1628
        %v1630 = vpop.f32.mrb[0].mxu0
        %1631 = vmatprep.mubr.f32.mxu0 0.0
        %1632 = vmatmul.mubr.f32.gmra.mrb[0].mxu0 %v394
        %v1633 = vpop.f32.mrb[0].mxu0
        %v1634 = vadd.f32 0.0, %v1633
        %v1635 = vpop.f32.mrb[0].mxu0
        %1636 = vmatprep.mubr.f32.mxu0 0.0
        %1637 = vmatmul.mubr.f32.gmra.mrb[0].mxu0 %v395
        %v1638 = vpop.f32.mrb[0].mxu0
        %v1639 = vadd.f32 0.0, %v1638
        %v1640 = vpop.f32.mrb[0].mxu0
        %1641 = vmatprep.mubr.f32.mxu0 0.0
        %1642 = vmatmul.mubr.f32.gmra.mrb[0].mxu0 %v396
        %v1643 = vpop.f32.mrb[0].mxu0
        %v1644 = vadd.f32 0.0, %v1643
        %v1645 = vpop.f32.mrb[0].mxu0
        %1646 = vmatprep.mubr.f32.mxu0 0.0
        %1647 = vmatmul.mubr.f32.gmra.mrb[0].mxu0 %v397
        %v1648 = vpop.f32.mrb[0].mxu0
        %v1649 = vadd.f32 0.0, %v1648
        %v1650 = vpop.f32.mrb[0].mxu0
        %1651 = vmatprep.mubr.f32.mxu0 0.0
        %1652 = vmatmul.mubr.f32.gmra.mrb[0].mxu0 %v398
        %v1653 = vpop.f32.mrb[0].mxu0
        %v1654 = vadd.f32 0.0, %v1653
        %v1655 = vpop.f32.mrb[0].mxu0
        %1656 = vmatprep.mubr.f32.mxu0 0.0
        %1657 = vmatmul.mubr.f32.gmra.mrb[0].mxu0 %v399
        %v1658 = vpop.f32.mrb[0].mxu0
        %v1659 = vadd.f32 0.0, %v1658
        %v1660 = vpop.f32.mrb[0].mxu0
        %1661 = vmatprep.mubr.f32.mxu0 0.0
        %1662 = vmatmul.mubr.f32.gmra.mrb[0].mxu0 %v400
        %v1663 = vpop.f32.mrb[0].mxu0
        %v1664 = vadd.f32 0.0, %v1663
        %v1665 = vpop.f32.mrb[0].mxu0
        %1666 = vmatprep.mubr.f32.mxu0 0.0
        %1667 = vmatmul.mubr.f32.gmra.mrb[0].mxu0 %v401
        %v1668 = vpop.f32.mrb[0].mxu0
        %v1669 = vadd.f32 0.0, %v1668
        %v1670 = vpop.f32.mrb[0].mxu0
        %1671 = vmatprep.mubr.f32.mxu0 0.0
        %1672 = vmatmul.mubr.f32.gmra.mrb[0].mxu0 %v402
        %v1673 = vpop.f32.mrb[0].mxu0
        %v1674 = vadd.f32 0.0, %v1673
        %v1675 = vpop.f32.mrb[0].mxu0
        %1676 = vdwg.mxu0
        %v1677 = vlaneseq
        %v1678 = vshrl.u32 %v1677, 7
        %v1679 = vsub.s32 0, %v1678
        %v1680 = vrot.slane %v959, %v1679
        %v1681 = vadd.f32 %v1680, %v1599
        %v1682 = vadd.f32 %v1680, %v1604
        %v1683 = vadd.f32 %v1680, %v1609
        %v1684 = vadd.f32 %v1680, %v1614
        %v1685 = vadd.f32 %v1680, %v1619
        %v1686 = vadd.f32 %v1680, %v1624
        %v1687 = vadd.f32 %v1680, %v1629
        %v1688 = vadd.f32 %v1680, %v1634
        %v1689 = vadd.f32 %v1680, %v1639
        %v1690 = vadd.f32 %v1680, %v1644
        %v1691 = vadd.f32 %v1680, %v1649
        %v1692 = vadd.f32 %v1680, %v1654
        %v1693 = vadd.f32 %v1680, %v1659
        %v1694 = vadd.f32 %v1680, %v1664
        %v1695 = vadd.f32 %v1680, %v1669
        %v1696 = vadd.f32 %v1680, %v1674
        %v1697 = vlaneseq
        %v1698 = vshrl.u32 %v1697, 7
        %v1699 = vsub.s32 1, %v1698
        %v1700 = vrot.slane %v959, %v1699
        %v1701 = vadd.f32 %v1700, %v1599
        %v1702 = vadd.f32 %v1700, %v1604
        %v1703 = vadd.f32 %v1700, %v1609
        %v1704 = vadd.f32 %v1700, %v1614
        %v1705 = vadd.f32 %v1700, %v1619
        %v1706 = vadd.f32 %v1700, %v1624
        %v1707 = vadd.f32 %v1700, %v1629
        %v1708 = vadd.f32 %v1700, %v1634
        %v1709 = vadd.f32 %v1700, %v1639
        %v1710 = vadd.f32 %v1700, %v1644
        %v1711 = vadd.f32 %v1700, %v1649
        %v1712 = vadd.f32 %v1700, %v1654
        %v1713 = vadd.f32 %v1700, %v1659
        %v1714 = vadd.f32 %v1700, %v1664
        %v1715 = vadd.f32 %v1700, %v1669
        %v1716 = vadd.f32 %v1700, %v1674
        %vm1717 = vcmp.gt.f32.partialorder %v1701, 0.5
        %vm1718 = vcmp.gt.f32.partialorder %v1702, 0.5
        %vm1719 = vcmp.gt.f32.partialorder %v1703, 0.5
        %vm1720 = vcmp.gt.f32.partialorder %v1704, 0.5
        %vm1721 = vcmp.gt.f32.partialorder %v1705, 0.5
        %vm1722 = vcmp.gt.f32.partialorder %v1706, 0.5
        %vm1723 = vcmp.gt.f32.partialorder %v1707, 0.5
        %vm1724 = vcmp.gt.f32.partialorder %v1708, 0.5
        %vm1725 = vcmp.gt.f32.partialorder %v1709, 0.5
        %vm1726 = vcmp.gt.f32.partialorder %v1710, 0.5
        %vm1727 = vcmp.gt.f32.partialorder %v1711, 0.5
        %vm1728 = vcmp.gt.f32.partialorder %v1712, 0.5
        %vm1729 = vcmp.gt.f32.partialorder %v1713, 0.5
        %vm1730 = vcmp.gt.f32.partialorder %v1714, 0.5
        %vm1731 = vcmp.gt.f32.partialorder %v1715, 0.5
        %vm1732 = vcmp.gt.f32.partialorder %v1716, 0.5
        %1749 = vrot.lane.b32.xlu0 %v1681, 1
        %v1750 = vpop.permute.xlu0 %1749
        %1751 = vrot.lane.b32.xlu0 %v1682, 1
        %v1752 = vpop.permute.xlu0 %1751
        %1753 = vrot.lane.b32.xlu0 %v1683, 1
        %v1754 = vpop.permute.xlu0 %1753
        %1755 = vrot.lane.b32.xlu0 %v1684, 1
        %v1756 = vpop.permute.xlu0 %1755
        %1757 = vrot.lane.b32.xlu0 %v1685, 1
        %v1758 = vpop.permute.xlu0 %1757
        %1759 = vrot.lane.b32.xlu0 %v1686, 1
        %v1760 = vpop.permute.xlu0 %1759
        %1761 = vrot.lane.b32.xlu0 %v1687, 1
        %v1762 = vpop.permute.xlu0 %1761
        %1763 = vrot.lane.b32.xlu0 %v1688, 1
        %v1764 = vpop.permute.xlu0 %1763
        %1765 = vrot.lane.b32.xlu0 %v1689, 1
        %v1766 = vpop.permute.xlu0 %1765
        %1767 = vrot.lane.b32.xlu0 %v1690, 1
        %v1768 = vpop.permute.xlu0 %1767
        %1769 = vrot.lane.b32.xlu0 %v1691, 1
        %v1770 = vpop.permute.xlu0 %1769
        %1771 = vrot.lane.b32.xlu0 %v1692, 1
        %v1772 = vpop.permute.xlu0 %1771
        %1773 = vrot.lane.b32.xlu0 %v1693, 1
        %v1774 = vpop.permute.xlu0 %1773
        %1775 = vrot.lane.b32.xlu0 %v1694, 1
        %v1776 = vpop.permute.xlu0 %1775
        %1777 = vrot.lane.b32.xlu0 %v1695, 1
        %v1778 = vpop.permute.xlu0 %1777
        %1779 = vrot.lane.b32.xlu0 %v1696, 1
        %v1780 = vpop.permute.xlu0 %1779
        %v1797 = vsel %vm1717, -inf, %v1750
        %v1798 = vsel %vm1718, -inf, %v1752
        %v1799 = vsel %vm1719, -inf, %v1754
        %v1800 = vsel %vm1720, -inf, %v1756
        %v1801 = vsel %vm1721, -inf, %v1758
        %v1802 = vsel %vm1722, -inf, %v1760
        %v1803 = vsel %vm1723, -inf, %v1762
        %v1804 = vsel %vm1724, -inf, %v1764
        %v1805 = vsel %vm1725, -inf, %v1766
        %v1806 = vsel %vm1726, -inf, %v1768
        %v1807 = vsel %vm1727, -inf, %v1770
        %v1808 = vsel %vm1728, -inf, %v1772
        %v1809 = vsel %vm1729, -inf, %v1774
        %v1810 = vsel %vm1730, -inf, %v1776
        %v1811 = vsel %vm1731, -inf, %v1778
        %v1812 = vsel %vm1732, -inf, %v1780
        %1829 = vrot.lane.b32.xlu0 %v1797, 127
        %v1830 = vpop.permute.xlu0 %1829
        %1831 = vrot.lane.b32.xlu0 %v1798, 127
        %v1832 = vpop.permute.xlu0 %1831
        %1833 = vrot.lane.b32.xlu0 %v1799, 127
        %v1834 = vpop.permute.xlu0 %1833
        %1835 = vrot.lane.b32.xlu0 %v1800, 127
        %v1836 = vpop.permute.xlu0 %1835
        %1837 = vrot.lane.b32.xlu0 %v1801, 127
        %v1838 = vpop.permute.xlu0 %1837
        %1839 = vrot.lane.b32.xlu0 %v1802, 127
        %v1840 = vpop.permute.xlu0 %1839
        %1841 = vrot.lane.b32.xlu0 %v1803, 127
        %v1842 = vpop.permute.xlu0 %1841
        %1843 = vrot.lane.b32.xlu0 %v1804, 127
        %v1844 = vpop.permute.xlu0 %1843
        %1845 = vrot.lane.b32.xlu0 %v1805, 127
        %v1846 = vpop.permute.xlu0 %1845
        %1847 = vrot.lane.b32.xlu0 %v1806, 127
        %v1848 = vpop.permute.xlu0 %1847
        %1849 = vrot.lane.b32.xlu0 %v1807, 127
        %v1850 = vpop.permute.xlu0 %1849
        %1851 = vrot.lane.b32.xlu0 %v1808, 127
        %v1852 = vpop.permute.xlu0 %1851
        %1853 = vrot.lane.b32.xlu0 %v1809, 127
        %v1854 = vpop.permute.xlu0 %1853
        %1855 = vrot.lane.b32.xlu0 %v1810, 127
        %v1856 = vpop.permute.xlu0 %1855
        %1857 = vrot.lane.b32.xlu0 %v1811, 127
        %v1858 = vpop.permute.xlu0 %1857
        %1859 = vrot.lane.b32.xlu0 %v1812, 127
        %v1860 = vpop.permute.xlu0 %1859
        %v1877 = vsub.f32 %v1227, %v1830
        %v1878 = vsub.f32 %v1228, %v1832
        %v1879 = vsub.f32 %v1229, %v1834
        %v1880 = vsub.f32 %v1230, %v1836
        %v1881 = vsub.f32 %v1231, %v1838
        %v1882 = vsub.f32 %v1232, %v1840
        %v1883 = vsub.f32 %v1233, %v1842
        %v1884 = vsub.f32 %v1234, %v1844
        %v1885 = vsub.f32 %v1235, %v1846
        %v1886 = vsub.f32 %v1236, %v1848
        %v1887 = vsub.f32 %v1237, %v1850
        %v1888 = vsub.f32 %v1238, %v1852
        %v1889 = vsub.f32 %v1239, %v1854
        %v1890 = vsub.f32 %v1240, %v1856
        %v1891 = vsub.f32 %v1241, %v1858
        %v1892 = vsub.f32 %v1242, %v1860
        %v1893 = vstv %s332
        %v1894 = vadd.s32 %v337, %v1893
        %v1895 = vadd.s32 %v338, %v1893
        %v1896 = vadd.s32 %v339, %v1893
        %v1897 = vadd.s32 %v340, %v1893
        %v1898 = vadd.s32 %v341, %v1893
        %v1899 = vadd.s32 %v342, %v1893
        %v1900 = vadd.s32 %v343, %v1893
        %v1901 = vadd.s32 %v344, %v1893
        %v1902 = vadd.s32 %v345, %v1893
        %v1903 = vadd.s32 %v346, %v1893
        %v1904 = vadd.s32 %v347, %v1893
        %v1905 = vadd.s32 %v348, %v1893
        %v1906 = vadd.s32 %v349, %v1893
        %v1907 = vadd.s32 %v350, %v1893
        %v1908 = vadd.s32 %v351, %v1893
        %v1909 = vadd.s32 %v352, %v1893
        %1911 = vset.pattern.permute.xlu0 0
        %1912 = vperm.xlu0 %1911, %v1877
        %v1913 = vpop.permute.xlu0 %1912
        %1916 = vset.pattern.permute.xlu0 0
        %1917 = vperm.xlu0 %1916, %v1878
        %v1918 = vpop.permute.xlu0 %1917
        %1921 = vset.pattern.permute.xlu0 0
        %1922 = vperm.xlu0 %1921, %v1879
        %v1923 = vpop.permute.xlu0 %1922
        %1926 = vset.pattern.permute.xlu0 0
        %1927 = vperm.xlu0 %1926, %v1880
        %v1928 = vpop.permute.xlu0 %1927
        %1931 = vset.pattern.permute.xlu0 0
        %1932 = vperm.xlu0 %1931, %v1881
        %v1933 = vpop.permute.xlu0 %1932
        %1936 = vset.pattern.permute.xlu0 0
        %1937 = vperm.xlu0 %1936, %v1882
        %v1938 = vpop.permute.xlu0 %1937
        %1941 = vset.pattern.permute.xlu0 0
        %1942 = vperm.xlu0 %1941, %v1883
        %v1943 = vpop.permute.xlu0 %1942
        %1946 = vset.pattern.permute.xlu0 0
        %1947 = vperm.xlu0 %1946, %v1884
        %v1948 = vpop.permute.xlu0 %1947
        %1951 = vset.pattern.permute.xlu0 0
        %1952 = vperm.xlu0 %1951, %v1885
        %v1953 = vpop.permute.xlu0 %1952
        %1956 = vset.pattern.permute.xlu0 0
        %1957 = vperm.xlu0 %1956, %v1886
        %v1958 = vpop.permute.xlu0 %1957
        %1961 = vset.pattern.permute.xlu0 0
        %1962 = vperm.xlu0 %1961, %v1887
        %v1963 = vpop.permute.xlu0 %1962
        %1966 = vset.pattern.permute.xlu0 0
        %1967 = vperm.xlu0 %1966, %v1888
        %v1968 = vpop.permute.xlu0 %1967
        %1971 = vset.pattern.permute.xlu0 0
        %1972 = vperm.xlu0 %1971, %v1889
        %v1973 = vpop.permute.xlu0 %1972
        %1976 = vset.pattern.permute.xlu0 0
        %1977 = vperm.xlu0 %1976, %v1890
        %v1978 = vpop.permute.xlu0 %1977
        %1981 = vset.pattern.permute.xlu0 0
        %1982 = vperm.xlu0 %1981, %v1891
        %v1983 = vpop.permute.xlu0 %1982
        %1986 = vset.pattern.permute.xlu0 0
        %1987 = vperm.xlu0 %1986, %v1892
        %v1988 = vpop.permute.xlu0 %1987
        %v1991 = vlaneseq
        %v1992 = vshrl.u32 %v1991, 7
        %v1993 = vsub.s32 0, %v1992
        %v1994 = vrot.slane %v674, %v1993
        %v1996 = vadd.f32 %v1913, %v1994
        %v1997 = vadd.f32 %v1918, %v1994
        %v1998 = vadd.f32 %v1923, %v1994
        %v1999 = vadd.f32 %v1928, %v1994
        %v2000 = vadd.f32 %v1933, %v1994
        %v2001 = vadd.f32 %v1938, %v1994
        %v2002 = vadd.f32 %v1943, %v1994
        %v2003 = vadd.f32 %v1948, %v1994
        %v2004 = vadd.f32 %v1953, %v1994
        %v2005 = vadd.f32 %v1958, %v1994
        %v2006 = vadd.f32 %v1963, %v1994
        %v2007 = vadd.f32 %v1968, %v1994
        %v2008 = vadd.f32 %v1973, %v1994
        %v2009 = vadd.f32 %v1978, %v1994
        %v2010 = vadd.f32 %v1983, %v1994
        %v2011 = vadd.f32 %v1988, %v1994
        %vm2012 = vcmp.ge.s32.totalorder %v354, %v1894
        %vm2013 = vcmp.ge.s32.totalorder %v354, %v1895
        %vm2014 = vcmp.ge.s32.totalorder %v354, %v1896
        %vm2015 = vcmp.ge.s32.totalorder %v354, %v1897
        %vm2016 = vcmp.ge.s32.totalorder %v354, %v1898
        %vm2017 = vcmp.ge.s32.totalorder %v354, %v1899
        %vm2018 = vcmp.ge.s32.totalorder %v354, %v1900
        %vm2019 = vcmp.ge.s32.totalorder %v354, %v1901
        %vm2020 = vcmp.ge.s32.totalorder %v354, %v1902
        %vm2021 = vcmp.ge.s32.totalorder %v354, %v1903
        %vm2022 = vcmp.ge.s32.totalorder %v354, %v1904
        %vm2023 = vcmp.ge.s32.totalorder %v354, %v1905
        %vm2024 = vcmp.ge.s32.totalorder %v354, %v1906
        %vm2025 = vcmp.ge.s32.totalorder %v354, %v1907
        %vm2026 = vcmp.ge.s32.totalorder %v354, %v1908
        %vm2027 = vcmp.ge.s32.totalorder %v354, %v1909
        %v2028 = vsel %vm420, 1, 0
        %v2029 = vlaneseq
        %v2030 = vshrl.u32 %v2029, 7
        %v2031 = vsub.s32 0, %v2030
        %v2032 = vrot.slane %v2028, %v2031
        %vm2033 = vcmp.eq.s32.totalorder %v2032, 1
        %vm2034 = vmand %vm2012, %vm2033
        %vm2035 = vmand %vm2013, %vm2033
        %vm2036 = vmand %vm2014, %vm2033
        %vm2037 = vmand %vm2015, %vm2033
        %vm2038 = vmand %vm2016, %vm2033
        %vm2039 = vmand %vm2017, %vm2033
        %vm2040 = vmand %vm2018, %vm2033
        %vm2041 = vmand %vm2019, %vm2033
        %vm2042 = vmand %vm2020, %vm2033
        %vm2043 = vmand %vm2021, %vm2033
        %vm2044 = vmand %vm2022, %vm2033
        %vm2045 = vmand %vm2023, %vm2033
        %vm2046 = vmand %vm2024, %vm2033
        %vm2047 = vmand %vm2025, %vm2033
        %vm2048 = vmand %vm2026, %vm2033
        %vm2049 = vmand %vm2027, %vm2033
        %v2050 = vsel %vm2034, %v1996, -inf
        %v2051 = vsel %vm2035, %v1997, -inf
        %v2052 = vsel %vm2036, %v1998, -inf
        %v2053 = vsel %vm2037, %v1999, -inf
        %v2054 = vsel %vm2038, %v2000, -inf
        %v2055 = vsel %vm2039, %v2001, -inf
        %v2056 = vsel %vm2040, %v2002, -inf
        %v2057 = vsel %vm2041, %v2003, -inf
        %v2058 = vsel %vm2042, %v2004, -inf
        %v2059 = vsel %vm2043, %v2005, -inf
        %v2060 = vsel %vm2044, %v2006, -inf
        %v2061 = vsel %vm2045, %v2007, -inf
        %v2062 = vsel %vm2046, %v2008, -inf
        %v2063 = vsel %vm2047, %v2009, -inf
        %v2064 = vsel %vm2048, %v2010, -inf
        %v2065 = vsel %vm2049, %v2011, -inf
        %2066 = vst [vmem:[%s311] sm:$0xff] %v2050
        %2067 = vst [vmem:[%s311 + $0x10] sm:$0xff] %v2051
        %2068 = vst [vmem:[%s311 + $0x20] sm:$0xff] %v2052
        %2069 = vst [vmem:[%s311 + $0x30] sm:$0xff] %v2053
        %2070 = vst [vmem:[%s311 + $0x40] sm:$0xff] %v2054
        %2071 = vst [vmem:[%s311 + $0x50] sm:$0xff] %v2055
        %2072 = vst [vmem:[%s311 + $0x60] sm:$0xff] %v2056
        %2073 = vst [vmem:[%s311 + $0x70] sm:$0xff] %v2057
        %2074 = vst [vmem:[%s311 + $0x80] sm:$0xff] %v2058
        %2075 = vst [vmem:[%s311 + $0x90] sm:$0xff] %v2059
        %2076 = vst [vmem:[%s311 + $0xa0] sm:$0xff] %v2060
        %2077 = vst [vmem:[%s311 + $0xb0] sm:$0xff] %v2061
        %2078 = vst [vmem:[%s311 + $0xc0] sm:$0xff] %v2062
        %2079 = vst [vmem:[%s311 + $0xd0] sm:$0xff] %v2063
        %2080 = vst [vmem:[%s311 + $0xe0] sm:$0xff] %v2064
        %2081 = vst [vmem:[%s311 + $0xf0] sm:$0xff] %v2065
        %v2083 = vlaneseq
        %v2084 = vshrl.u32 %v2083, 7
        %v2085 = vsub.s32 0, %v2084
        %v2086 = vrot.slane %v950, %v2085
        %v2088 = vadd.f32 %v1913, %v2086
        %v2089 = vadd.f32 %v1918, %v2086
        %v2090 = vadd.f32 %v1923, %v2086
        %v2091 = vadd.f32 %v1928, %v2086
        %v2092 = vadd.f32 %v1933, %v2086
        %v2093 = vadd.f32 %v1938, %v2086
        %v2094 = vadd.f32 %v1943, %v2086
        %v2095 = vadd.f32 %v1948, %v2086
        %v2096 = vadd.f32 %v1953, %v2086
        %v2097 = vadd.f32 %v1958, %v2086
        %v2098 = vadd.f32 %v1963, %v2086
        %v2099 = vadd.f32 %v1968, %v2086
        %v2100 = vadd.f32 %v1973, %v2086
        %v2101 = vadd.f32 %v1978, %v2086
        %v2102 = vadd.f32 %v1983, %v2086
        %v2103 = vadd.f32 %v1988, %v2086
        %v2104 = vadd.s32 %v354, 128
        %vm2105 = vcmp.ge.s32.totalorder %v2104, %v1894
        %vm2106 = vcmp.ge.s32.totalorder %v2104, %v1895
        %vm2107 = vcmp.ge.s32.totalorder %v2104, %v1896
        %vm2108 = vcmp.ge.s32.totalorder %v2104, %v1897
        %vm2109 = vcmp.ge.s32.totalorder %v2104, %v1898
        %vm2110 = vcmp.ge.s32.totalorder %v2104, %v1899
        %vm2111 = vcmp.ge.s32.totalorder %v2104, %v1900
        %vm2112 = vcmp.ge.s32.totalorder %v2104, %v1901
        %vm2113 = vcmp.ge.s32.totalorder %v2104, %v1902
        %vm2114 = vcmp.ge.s32.totalorder %v2104, %v1903
        %vm2115 = vcmp.ge.s32.totalorder %v2104, %v1904
        %vm2116 = vcmp.ge.s32.totalorder %v2104, %v1905
        %vm2117 = vcmp.ge.s32.totalorder %v2104, %v1906
        %vm2118 = vcmp.ge.s32.totalorder %v2104, %v1907
        %vm2119 = vcmp.ge.s32.totalorder %v2104, %v1908
        %vm2120 = vcmp.ge.s32.totalorder %v2104, %v1909
        %v2121 = vsel %vm703, 1, 0
        %v2122 = vlaneseq
        %v2123 = vshrl.u32 %v2122, 7
        %v2124 = vsub.s32 0, %v2123
        %v2125 = vrot.slane %v2121, %v2124
        %vm2126 = vcmp.eq.s32.totalorder %v2125, 1
        %vm2127 = vmand %vm2105, %vm2126
        %vm2128 = vmand %vm2106, %vm2126
        %vm2129 = vmand %vm2107, %vm2126
        %vm2130 = vmand %vm2108, %vm2126
        %vm2131 = vmand %vm2109, %vm2126
        %vm2132 = vmand %vm2110, %vm2126
        %vm2133 = vmand %vm2111, %vm2126
        %vm2134 = vmand %vm2112, %vm2126
        %vm2135 = vmand %vm2113, %vm2126
        %vm2136 = vmand %vm2114, %vm2126
        %vm2137 = vmand %vm2115, %vm2126
        %vm2138 = vmand %vm2116, %vm2126
        %vm2139 = vmand %vm2117, %vm2126
        %vm2140 = vmand %vm2118, %vm2126
        %vm2141 = vmand %vm2119, %vm2126
        %vm2142 = vmand %vm2120, %vm2126
        %v2143 = vsel %vm2127, %v2088, -inf
        %v2144 = vsel %vm2128, %v2089, -inf
        %v2145 = vsel %vm2129, %v2090, -inf
        %v2146 = vsel %vm2130, %v2091, -inf
        %v2147 = vsel %vm2131, %v2092, -inf
        %v2148 = vsel %vm2132, %v2093, -inf
        %v2149 = vsel %vm2133, %v2094, -inf
        %v2150 = vsel %vm2134, %v2095, -inf
        %v2151 = vsel %vm2135, %v2096, -inf
        %v2152 = vsel %vm2136, %v2097, -inf
        %v2153 = vsel %vm2137, %v2098, -inf
        %v2154 = vsel %vm2138, %v2099, -inf
        %v2155 = vsel %vm2139, %v2100, -inf
        %v2156 = vsel %vm2140, %v2101, -inf
        %v2157 = vsel %vm2141, %v2102, -inf
        %v2158 = vsel %vm2142, %v2103, -inf
        %2159 = vst [vmem:[%s311 + $0x8] sm:$0xff] %v2143
        %2160 = vst [vmem:[%s311 + $0x18] sm:$0xff] %v2144
        %2161 = vst [vmem:[%s311 + $0x28] sm:$0xff] %v2145
        %2162 = vst [vmem:[%s311 + $0x38] sm:$0xff] %v2146
        %2163 = vst [vmem:[%s311 + $0x48] sm:$0xff] %v2147
        %2164 = vst [vmem:[%s311 + $0x58] sm:$0xff] %v2148
        %2165 = vst [vmem:[%s311 + $0x68] sm:$0xff] %v2149
        %2166 = vst [vmem:[%s311 + $0x78] sm:$0xff] %v2150
        %2167 = vst [vmem:[%s311 + $0x88] sm:$0xff] %v2151
        %2168 = vst [vmem:[%s311 + $0x98] sm:$0xff] %v2152
        %2169 = vst [vmem:[%s311 + $0xa8] sm:$0xff] %v2153
        %2170 = vst [vmem:[%s311 + $0xb8] sm:$0xff] %v2154
        %2171 = vst [vmem:[%s311 + $0xc8] sm:$0xff] %v2155
        %2172 = vst [vmem:[%s311 + $0xd8] sm:$0xff] %v2156
        %2173 = vst [vmem:[%s311 + $0xe8] sm:$0xff] %v2157
        %2174 = vst [vmem:[%s311 + $0xf8] sm:$0xff] %v2158
        %s2175 = sand.u32 %s186, 1
        %s2176 = scalar_lea.sflag [#allocation3], %s2175
        %s2177 = sand.u32 %s186, 1
        %s2178 = smul.addr %s2177, 256
        %s2179 = scalar_lea.vmem [#allocation5], %s2178
        // Predicated region
        $region49: #{tpu_custom_call.1} parent=43 // pred_check
          %p2180 = pneg %p196
        $region50: #{tpu_custom_call.1} parent=43 // pred_check_branch
          %2182 = sbr.rel (%p2180) target = $region52
        $region51: #{tpu_custom_call.1} parent=43 // pred_region
          %s2183 = smul.u32 16, %s26
          %s2185 = ssub.s32 4096, 4096
          %2186 = vsyncadd %s2176, %s2185
          %s2187 = smul.addr %s2183, 2
          %s2188 = smul.addr %s25, 64
          %s2189 = sadd.s32 %s2187, %s2188
          %s2190 = smul.addr %s2189, 128
          %s2191 = scalar_lea.hbm %s6, %s2190
          %s2192 = sshll.u32 %s2179, 4
          %s2193 = int_to_ptr.vmem [resolvable:$true] %s2192
          %2198 = dma.vmem_to_hbm [thread:$0]  %s2193, 4096, %s2191, %s2176, 256, 256, 16
        $region52: #{tpu_custom_call.1} parent=43 // pred_fallthru
          _
      $region44: #{tpu_custom_call.1} parent=5 // pred_fallthru
        _
      %p2199 = scmp.le.s32.totalorder 2, %s16
      // Predicated region
      $region53: #{tpu_custom_call.1} parent=5 // pred_check
        %p2200 = pneg %p2199
      $region54: #{tpu_custom_call.1} parent=5 // pred_check_branch
        %2202 = sbr.rel (%p2200) target = $region56
      $region55: #{tpu_custom_call.1} parent=5 // pred_region
        %s2203 = ssub.s32 %s16, 2
        // Predicated region
        $region57: #{tpu_custom_call.1} parent=55 // pred_check
          %p2204 = pneg %p202
        $region58: #{tpu_custom_call.1} parent=55 // pred_check_branch
          %2206 = sbr.rel (%p2204) target = $region60
        $region59: #{tpu_custom_call.1} parent=55 // pred_region
          %s2207 = sand.u32 %s187, 1
          %s2208 = scalar_lea.sflag [#allocation3], %s2207
          %s2209 = sand.u32 %s187, 1
          %s2210 = smul.addr %s2209, 256
          %s2211 = scalar_lea.vmem [#allocation5], %s2210
          %2212 = dma.done %s2208, 4096
        $region60: #{tpu_custom_call.1} parent=55 // pred_fallthru
          _
      $region56: #{tpu_custom_call.1} parent=5 // pred_fallthru
        _
    $region6: #{tpu_custom_call.1} parent=1 // loop_footer
      %s20 = sadd.s32 1, %s16
    $region7: #{tpu_custom_call.1} parent=1 // loop_footer_branch
      %15 = sbr.rel target = $region3
    $region8: #{tpu_custom_call.1} parent=1 // loop_exit
      _
    %2213 = vsyncpa [#allocation3], 1
    %s2214 = scalar_lea.sflag [#allocation3], 1
    %2215 = vsyncpa %s2214, 1
    %2216 = vsyncpa [#allocation4], 1
    %s2217 = scalar_lea.sflag [#allocation4], 1
    %2218 = vsyncpa %s2217, 1

</llo_original>
